<compile_context>
chip_gen: v7x
topology: tpu7x:2x2x1
jax: 0.10.0
libtpu: 0.0.40
codegen_flags: <defaults>
</compile_context>

<pallas_src>
import functools

import jax
import jax.numpy as jnp
import numpy as np
from jax import lax
from jax.experimental import pallas as pl
from jax.experimental.pallas import tpu as pltpu


def _choose_tile(n, max_tile):
    """Largest tile <= max_tile that is a multiple of 128 and divides n.

    n is either the full (small) extent or a multiple of 128 (inputs are padded
    to 128-aligned N by the wrapper), so the search always succeeds.
    """
    if n <= max_tile:
        return n
    start = (max_tile // 128) * 128
    for t in range(start, 127, -128):
        if n % t == 0:
            return t
    return n


# ----------------------------------------------------------------------------
# Kernel 1: pointwise Conv1d (kernel_size=1)  ==  y[b,:,n] = W @ x[b,:,n] + bias
# Tiled over (B, N) for pipelining / megacore; weight + bias stay resident.
# Matmul runs on bf16 operands with f32 accumulation; bias add in f32.
# ----------------------------------------------------------------------------
def _pointwise_conv_kernel(x_ref, w_ref, b_ref, o_ref):
    x = x_ref[0].astype(jnp.bfloat16)          # (Cin, TN)
    w = w_ref[...].astype(jnp.bfloat16)        # (Cout, Cin)
    y = jnp.dot(w, x, preferred_element_type=jnp.float32) + b_ref[...]
    o_ref[0] = y.astype(o_ref.dtype)


def pointwise_conv(x, w, b, *, out_dtype=None, tn_max=1024):
    """x: (B, Cin, N), w: (Cout, Cin), b: (Cout,) -> (B, Cout, N)."""
    B, Cin, N = x.shape
    Cout = w.shape[0]
    if out_dtype is None:
        out_dtype = x.dtype
    TN = _choose_tile(N, tn_max)
    grid = (B, N // TN)
    cost = pl.CostEstimate(
        flops=2 * B * Cout * Cin * N,
        transcendentals=0,
        bytes_accessed=int(B * Cin * N * x.dtype.itemsize
                           + Cout * Cin * w.dtype.itemsize
                           + 4 * Cout
                           + B * Cout * N * np.dtype(out_dtype).itemsize),
    )
    return pl.pallas_call(
        _pointwise_conv_kernel,
        out_shape=jax.ShapeDtypeStruct((B, Cout, N), out_dtype),
        grid=grid,
        in_specs=[
            pl.BlockSpec((1, Cin, TN), lambda i, j: (i, 0, j)),
            pl.BlockSpec((Cout, Cin), lambda i, j: (0, 0)),   # resident weight
            pl.BlockSpec((Cout, 1), lambda i, j: (0, 0)),     # resident bias
        ],
        out_specs=pl.BlockSpec((1, Cout, TN), lambda i, j: (i, 0, j)),
        compiler_params=pltpu.CompilerParams(
            dimension_semantics=("parallel", "parallel")),
        cost_estimate=cost,
    )(x, w, b.reshape(Cout, 1).astype(jnp.float32))


# ----------------------------------------------------------------------------
# Kernel 2: flash-style per-(batch, head) attention, tiled over q (and kv).
#   q is pre-scaled by 1/sqrt(dim) (folded into wq at weight-prep time).
#   With the default tile caps the kv block covers the full padded sequence,
#   so the kv grid axis has one step and K/V are fetched once per (b, h).
#   scores^T tile s = k^T q : (Tk, Tq); online softmax; acc (dim, Tq) in VMEM.
#   Padded key columns (>= n_valid) are masked before the softmax.
# ----------------------------------------------------------------------------
def _flash_attn_kernel(q_ref, k_ref, v_ref, o_ref, m_sc, l_sc, acc_sc,
                       *, block_k, n_valid, masked):
    kv = pl.program_id(3)

    @pl.when(kv == 0)
    def _init():
        m_sc[...] = jnp.full(m_sc.shape, -jnp.inf, m_sc.dtype)
        l_sc[...] = jnp.zeros(l_sc.shape, l_sc.dtype)
        acc_sc[...] = jnp.zeros(acc_sc.shape, acc_sc.dtype)

    q = q_ref[0, 0, 0]            # (D, TQ) bf16, pre-scaled by 1/sqrt(D)
    k = k_ref[0, 0, 0]            # (D, TK) bf16
    v = v_ref[0, 0, 0]            # (D, TK) bf16

    # s[m, n] = sum_d k[d, m] * q[d, n] -> (TK, TQ).  f32 operands keep the
    # proven transposed-lhs dot_general lowering path; this dot is not the
    # HBM-bound kernel's bottleneck.  TODO(synk): bf16 operands after MLIR
    # inspection (perf-review item 5).
    s = lax.dot_general(k.astype(jnp.float32), q.astype(jnp.float32),
                        (((0,), (0,)), ((), ())),
                        preferred_element_type=jnp.float32)

    if masked:
        key_idx = lax.broadcasted_iota(jnp.int32, s.shape, 0) + kv * block_k
        s = jnp.where(key_idx < n_valid, s, -1e30)

    m_prev = m_sc[...]                                    # (1, TQ)
    m_new = jnp.maximum(m_prev, jnp.max(s, axis=0, keepdims=True))
    alpha = jnp.exp(m_prev - m_new)                       # (1, TQ)
    p = jnp.exp(s - m_new)                                # (TK, TQ) f32

    l_sc[...] = alpha * l_sc[...] + jnp.sum(p, axis=0, keepdims=True)
    acc_sc[...] = alpha * acc_sc[...] + jnp.dot(
        v, p.astype(jnp.bfloat16), preferred_element_type=jnp.float32)
    m_sc[...] = m_new

    @pl.when(kv == pl.num_programs(3) - 1)
    def _finalize():
        inv_l = pl.reciprocal(l_sc[...], approx=False)    # (1, TQ)
        o_ref[0, 0] = (acc_sc[...] * inv_l).astype(o_ref.dtype)


def heads_attention(q, k, v, *, slots, n_valid, tq_max=512, tk_max=2048):
    """q/k/v: packed (B, S, H, dim, Np) bf16; `slots` picks the S index of
    each operand (lets fused-projection outputs be consumed without slicing).
    Returns (B, H, dim, Np)."""
    B, _, H, D, Np = q.shape
    TQ = _choose_tile(Np, tq_max)
    TK = _choose_tile(Np, tk_max)
    nq, nk = Np // TQ, Np // TK
    sq, sk, sv = slots

    q_spec = pl.BlockSpec((1, 1, 1, D, TQ), lambda b, h, i, j: (b, sq, h, 0, i))
    k_spec = pl.BlockSpec((1, 1, 1, D, TK), lambda b, h, i, j: (b, sk, h, 0, j))
    v_spec = pl.BlockSpec((1, 1, 1, D, TK), lambda b, h, i, j: (b, sv, h, 0, j))
    o_spec = pl.BlockSpec((1, 1, D, TQ), lambda b, h, i, j: (b, h, 0, i))

    esize = q.dtype.itemsize
    # With TK == Np the kv block index never changes across q-tiles, so K/V
    # are fetched once per (b, h); otherwise they are re-read per q-tile.
    kv_rereads = 1 if TK == Np else nq
    cost = pl.CostEstimate(
        flops=4 * B * H * Np * Np * D,
        transcendentals=B * H * Np * Np,
        bytes_accessed=int(B * H * D * Np * esize * (2 + 2 * kv_rereads)),
    )

    kernel = functools.partial(_flash_attn_kernel, block_k=TK,
                               n_valid=n_valid, masked=(n_valid < Np))

    return pl.pallas_call(
        kernel,
        out_shape=jax.ShapeDtypeStruct((B, H, D, Np), q.dtype),
        grid=(B, H, nq, nk),
        in_specs=[q_spec, k_spec, v_spec],
        out_specs=o_spec,
        scratch_shapes=[
            pltpu.VMEM((1, TQ), jnp.float32),   # running max
            pltpu.VMEM((1, TQ), jnp.float32),   # running denom
            pltpu.VMEM((D, TQ), jnp.float32),   # output accumulator
        ],
        compiler_params=pltpu.CompilerParams(
            dimension_semantics=("parallel", "parallel", "parallel", "arbitrary")),
        cost_estimate=cost,
    )(q, k, v)


# ----------------------------------------------------------------------------
# Weight preparation (one-time, host side):
#   * permute projection output channels from PyTorch's [dim, head] ordering
#     (c = d*H + h) to [head, dim] ordering so head split/merge are free
#     reshapes; permute merge-weight columns to match.
#   * fold 1/sqrt(dim) into the q projection.
#   * build fused [k;v] and [q;k;v] projection weights (single conv launch for
#     SuperGlue's cross / self attention call patterns).
#   * weights are stored in bf16 (MXU operands); biases stay f32.
# ----------------------------------------------------------------------------
def prepare_params(params, num_heads):
    d_model = params["wq"].shape[0]
    dim = d_model // num_heads
    r = np.arange(d_model)
    perm = jnp.asarray((r % dim) * num_heads + (r // dim))
    scale = 1.0 / float(dim) ** 0.5

    wq = params["wq"][perm] * scale
    bq = params["bq"][perm] * scale
    wk = params["wk"][perm]
    bk = params["bk"][perm]
    wv = params["wv"][perm]
    bv = params["bv"][perm]

    bf = lambda a: a.astype(jnp.bfloat16)
    f32 = lambda a: a.astype(jnp.float32)
    return {
        "wq": bf(wq), "bq": f32(bq),
        "wk": bf(wk), "bk": f32(bk),
        "wv": bf(wv), "bv": f32(bv),
        "w_kv": bf(jnp.concatenate([wk, wv], axis=0)),
        "b_kv": f32(jnp.concatenate([bk, bv], axis=0)),
        "w_qkv": bf(jnp.concatenate([wq, wk, wv], axis=0)),
        "b_qkv": f32(jnp.concatenate([bq, bk, bv], axis=0)),
        "wm": bf(params["wm"][:, perm]), "bm": f32(params["bm"]),
    }


# ----------------------------------------------------------------------------
# Full MultiHeadedAttention forward (takes prepared / permuted params).
# Fusion is keyed on Python identity of the operands, matching SuperGlue's
# call patterns attn(x, source, source) / attn(x, x, x).
# ----------------------------------------------------------------------------
def multi_headed_attention(query, key, value, pparams, num_heads):
    """query/key/value: (B, d_model, N) in PyTorch NCL layout, f32."""
    B, d_model, N = query.shape
    dim = d_model // num_heads
    n_pad = (-N) % 128                 # lane-dense blocks (perf-review item 8)
    Np = N + n_pad

    def pad(x):
        return x if n_pad == 0 else jnp.pad(x, ((0, 0), (0, 0), (0, n_pad)))

    if (query is key) and (key is value):          # self attention: one conv
        qkv = pointwise_conv(pad(query), pparams["w_qkv"], pparams["b_qkv"],
                             out_dtype=jnp.bfloat16)
        packed = qkv.reshape(B, 3, num_heads, dim, Np)
        q_arr = k_arr = v_arr = packed
        slots = (0, 1, 2)
    elif key is value:                             # cross attention: fused K/V
        qp = pointwise_conv(pad(query), pparams["wq"], pparams["bq"],
                            out_dtype=jnp.bfloat16)
        kvp = pointwise_conv(pad(key), pparams["w_kv"], pparams["b_kv"],
                             out_dtype=jnp.bfloat16)
        q_arr = qp.reshape(B, 1, num_heads, dim, Np)
        k_arr = v_arr = kvp.reshape(B, 2, num_heads, dim, Np)
        slots = (0, 0, 1)
    else:                                          # fully general fallback
        q_arr = pointwise_conv(pad(query), pparams["wq"], pparams["bq"],
                               out_dtype=jnp.bfloat16).reshape(
                                   B, 1, num_heads, dim, Np)
        k_arr = pointwise_conv(pad(key), pparams["wk"], pparams["bk"],
                               out_dtype=jnp.bfloat16).reshape(
                                   B, 1, num_heads, dim, Np)
        v_arr = pointwise_conv(pad(value), pparams["wv"], pparams["bv"],
                               out_dtype=jnp.bfloat16).reshape(
                                   B, 1, num_heads, dim, Np)
        slots = (0, 0, 0)

    xh = heads_attention(q_arr, k_arr, v_arr, slots=slots, n_valid=N)

    x = xh.reshape(B, d_model, Np)                 # free merge (no transpose)
    out = pointwise_conv(x, pparams["wm"], pparams["bm"],
                         out_dtype=query.dtype)
    return out if n_pad == 0 else out[:, :, :N]


# ----------------------------------------------------------------------------
# Pure-JAX reference (mirrors the PyTorch code exactly, uses raw f32 params)
# ----------------------------------------------------------------------------
def reference(query, key, value, params, num_heads):
    B, d_model, N = query.shape
    dim = d_model // num_heads

    def conv(x, w, b):
        return jnp.einsum("oc,bcn->bon", w, x) + b[None, :, None]

    q = conv(query, params["wq"], params["bq"]).reshape(B, dim, num_heads, N)
    k = conv(key, params["wk"], params["bk"]).reshape(B, dim, num_heads, N)
    v = conv(value, params["wv"], params["bv"]).reshape(B, dim, num_heads, N)
    scores = jnp.einsum("bdhn,bdhm->bhnm", q, k) / (dim ** 0.5)
    prob = jax.nn.softmax(scores, axis=-1)
    x = jnp.einsum("bhnm,bdhm->bdhn", prob, v)
    x = x.reshape(B, dim * num_heads, N)
    return conv(x, params["wm"], params["bm"])


def _init_conv_params(key, d_model):
    keys = jax.random.split(key, 8)

    def winit(k, shape, fan_in):
        bound = 1.0 / np.sqrt(fan_in)
        return jax.random.uniform(k, shape, jnp.float32, -bound, bound)

    return {
        "wq": winit(keys[0], (d_model, d_model), d_model),
        "bq": winit(keys[1], (d_model,), d_model),
        "wk": winit(keys[2], (d_model, d_model), d_model),
        "bk": winit(keys[3], (d_model,), d_model),
        "wv": winit(keys[4], (d_model, d_model), d_model),
        "bv": winit(keys[5], (d_model,), d_model),
        "wm": winit(keys[6], (d_model, d_model), d_model),
        "bm": winit(keys[7], (d_model,), d_model),
    }


def _run_case(seed, B, d_model, N, H, atol=3e-2, rtol=3e-2):
    keys = jax.random.split(jax.random.PRNGKey(seed), 4)
    params = _init_conv_params(keys[0], d_model)
    query = jax.random.normal(keys[1], (B, d_model, N), jnp.float32)
    source = jax.random.normal(keys[2], (B, d_model, N), jnp.float32)
    other = jax.random.normal(keys[3], (B, d_model, N), jnp.float32)

    pparams = prepare_params(params, H)

    fwd_cross = jax.jit(lambda q, s, p: multi_headed_attention(q, s, s, p, H))
    fwd_self = jax.jit(lambda x, p: multi_headed_attention(x, x, x, p, H))
    fwd_gen = jax.jit(lambda q, k, v, p: multi_headed_attention(q, k, v, p, H))

    # Cross attention (fused K/V projection), as in attn(x, source, source).
    out = jax.block_until_ready(fwd_cross(query, source, pparams))
    np.testing.assert_allclose(
        np.asarray(out), np.asarray(reference(query, source, source, params, H)),
        atol=atol, rtol=rtol)

    # Self attention (fused Q/K/V projection), as in attn(x, x, x).
    out = jax.block_until_ready(fwd_self(source, pparams))
    np.testing.assert_allclose(
        np.asarray(out), np.asarray(reference(source, source, source, params, H)),
        atol=atol, rtol=rtol)

    # Fully general path (distinct q/k/v) for completeness.
    out = jax.block_until_ready(fwd_gen(query, source, other, pparams))
    np.testing.assert_allclose(
        np.asarray(out), np.asarray(reference(query, source, other, params, H)),
        atol=atol, rtol=rtol)


if __name__ == "__main__":
    # SuperGlue uses 4 heads.  Case 1: N=16 keypoints (not 128-aligned ->
    # exercises the pad + key-mask path).  Case 2: lane-aligned N=128.
    # Tolerances account for bf16 MXU operands (f32 accumulation).
    _run_case(seed=0, B=2, d_model=32, N=16, H=4)
    _run_case(seed=1, B=1, d_model=64, N=128, H=4)
    print("KERNEL_OK")
</pallas_src>

<mosaic_0001>
module attributes {stable_mosaic.version = 11 : i64} {
  func.func @_pointwise_conv_kernel(%arg0: i32, %arg1: i32, %arg2: memref<1x32x128xf32, #tpu.memory_space<vmem>>, %arg3: memref<64x32xbf16, #tpu.memory_space<vmem>>, %arg4: memref<64x1xf32, #tpu.memory_space<vmem>>, %arg5: memref<1x64x128xbf16, #tpu.memory_space<vmem>>) attributes {dimension_semantics = [#tpu.dimension_semantics<parallel>, #tpu.dimension_semantics<parallel>], iteration_bounds = array<i64: 2, 1>, scalar_prefetch = 0 : i64, scratch_operands = 0 : i64, tpu.core_type = #tpu.core_type<tc>, window_params = [{transform_indices = @transform_0, window_bounds = array<i64: 1, 32, 128>}, {pipeline_mode = #tpu.pipeline_mode<synchronous>, transform_indices = @transform_1, window_bounds = array<i64: 64, 32>}, {pipeline_mode = #tpu.pipeline_mode<synchronous>, transform_indices = @transform_2, window_bounds = array<i64: 64, 1>}, {transform_indices = @transform_3, window_bounds = array<i64: 1, 64, 128>}]} {
    %c0 = arith.constant 0 : index
    %c0_0 = arith.constant 0 : index
    %c0_1 = arith.constant 0 : index
    %0 = vector.load %arg2[%c0, %c0_0, %c0_1] : memref<1x32x128xf32, #tpu.memory_space<vmem>>, vector<1x32x128xf32>
    %1 = vector.shape_cast %0 : vector<1x32x128xf32> to vector<32x128xf32>
    %2 = arith.truncf %1 : vector<32x128xf32> to vector<32x128xbf16>
    %c0_2 = arith.constant 0 : index
    %c0_3 = arith.constant 0 : index
    %3 = vector.load %arg3[%c0_2, %c0_3] : memref<64x32xbf16, #tpu.memory_space<vmem>>, vector<64x32xbf16>
    %cst = arith.constant dense<0.000000e+00> : vector<64x128xf32>
    %4 = tpu.matmul %3, %2, %cst {dimension_numbers = #tpu.dot_dimension_numbers<[1], [0], [0], [1], [0, 0, 1, 1], [], []>} : vector<64x32xbf16>, vector<32x128xbf16>, vector<64x128xf32> -> vector<64x128xf32>
    %c0_4 = arith.constant 0 : index
    %c0_5 = arith.constant 0 : index
    %5 = vector.load %arg4[%c0_4, %c0_5] : memref<64x1xf32, #tpu.memory_space<vmem>>, vector<64x1xf32>
    %6 = vector.broadcast %5 : vector<64x1xf32> to vector<64x128xf32>
    %7 = arith.addf %4, %6 : vector<64x128xf32>
    %8 = arith.truncf %7 : vector<64x128xf32> to vector<64x128xbf16>
    %c0_6 = arith.constant 0 : index
    %c0_7 = arith.constant 0 : index
    %c0_8 = arith.constant 0 : index
    %9 = vector.load %arg5[%c0_6, %c0_7, %c0_8] : memref<1x64x128xbf16, #tpu.memory_space<vmem>>, vector<1x64x128xbf16>
    %10 = vector.shape_cast %9 : vector<1x64x128xbf16> to vector<64x128xbf16>
    %11 = vector.shape_cast %8 : vector<64x128xbf16> to vector<1x64x128xbf16>
    tpu.vector_store %arg5[%c0_6, %c0_7, %c0_8], %11 {strides = array<i32>} : memref<1x64x128xbf16, #tpu.memory_space<vmem>>, vector<1x64x128xbf16>,
    return
  }
  func.func @transform_0(%arg0: i32, %arg1: i32) -> (i32, i32, i32) {
    %c0_i32 = arith.constant 0 : i32
    %c0_i32_0 = arith.constant 0 : i32
    return %arg0, %c0_i32, %arg1 : i32, i32, i32
  }
  func.func @transform_1(%arg0: i32, %arg1: i32) -> (i32, i32) {
    %c0_i32 = arith.constant 0 : i32
    %c0_i32_0 = arith.constant 0 : i32
    %c0_i32_1 = arith.constant 0 : i32
    return %c0_i32, %c0_i32_0 : i32, i32
  }
  func.func @transform_2(%arg0: i32, %arg1: i32) -> (i32, i32) {
    %c0_i32 = arith.constant 0 : i32
    %c0_i32_0 = arith.constant 0 : i32
    %c0_i32_1 = arith.constant 0 : i32
    return %c0_i32, %c0_i32_0 : i32, i32
  }
  func.func @transform_3(%arg0: i32, %arg1: i32) -> (i32, i32, i32) {
    %c0_i32 = arith.constant 0 : i32
    %c0_i32_0 = arith.constant 0 : i32
    return %arg0, %c0_i32, %arg1 : i32, i32, i32
  }
}

module attributes {stable_mosaic.version = 11 : i64} {
  func.func @_flash_attn_kernel(%arg0: i32, %arg1: i32, %arg2: i32, %arg3: i32, %arg4: memref<1x1x1x8x128xbf16, #tpu.memory_space<vmem>>, %arg5: memref<1x1x1x8x128xbf16, #tpu.memory_space<vmem>>, %arg6: memref<1x1x1x8x128xbf16, #tpu.memory_space<vmem>>, %arg7: memref<1x1x8x128xbf16, #tpu.memory_space<vmem>>, %arg8: memref<1x128xf32, #tpu.memory_space<vmem>>, %arg9: memref<1x128xf32, #tpu.memory_space<vmem>>, %arg10: memref<8x128xf32, #tpu.memory_space<vmem>>) attributes {dimension_semantics = [#tpu.dimension_semantics<parallel>, #tpu.dimension_semantics<parallel>, #tpu.dimension_semantics<parallel>, #tpu.dimension_semantics<arbitrary>], iteration_bounds = array<i64: 2, 4, 1, 1>, scalar_prefetch = 0 : i64, scratch_operands = 3 : i64, tpu.core_type = #tpu.core_type<tc>, window_params = [{transform_indices = @transform_0, window_bounds = array<i64: 1, 1, 1, 8, 128>}, {transform_indices = @transform_1, window_bounds = array<i64: 1, 1, 1, 8, 128>}, {transform_indices = @transform_2, window_bounds = array<i64: 1, 1, 1, 8, 128>}, {transform_indices = @transform_3, window_bounds = array<i64: 1, 1, 8, 128>}]} {
    %c0_i32 = arith.constant 0 : i32
    %0 = arith.cmpi eq, %arg3, %c0_i32 : i32
    %1 = arith.extui %0 : i1 to i32
    %c0_i32_0 = arith.constant 0 : i32
    %2 = arith.cmpi ne, %1, %c0_i32_0 : i32
    scf.if %2 {
      %cst_33 = arith.constant 0xFF800000 : f32
      %46 = vector.broadcast %cst_33 : f32 to vector<1x128xf32>
      %c0_34 = arith.constant 0 : index
      %c0_35 = arith.constant 0 : index
      %47 = vector.load %arg8[%c0_34, %c0_35] : memref<1x128xf32, #tpu.memory_space<vmem>>, vector<1x128xf32>
      tpu.vector_store %arg8[%c0_34, %c0_35], %46 {strides = array<i32>} : memref<1x128xf32, #tpu.memory_space<vmem>>, vector<1x128xf32>,
      %cst_36 = arith.constant 0.000000e+00 : f32
      %48 = vector.broadcast %cst_36 : f32 to vector<1x128xf32>
      %c0_37 = arith.constant 0 : index
      %c0_38 = arith.constant 0 : index
      %49 = vector.load %arg9[%c0_37, %c0_38] : memref<1x128xf32, #tpu.memory_space<vmem>>, vector<1x128xf32>
      tpu.vector_store %arg9[%c0_37, %c0_38], %48 {strides = array<i32>} : memref<1x128xf32, #tpu.memory_space<vmem>>, vector<1x128xf32>,
      %cst_39 = arith.constant 0.000000e+00 : f32
      %50 = vector.broadcast %cst_39 : f32 to vector<8x128xf32>
      %c0_40 = arith.constant 0 : index
      %c0_41 = arith.constant 0 : index
      %51 = vector.load %arg10[%c0_40, %c0_41] : memref<8x128xf32, #tpu.memory_space<vmem>>, vector<8x128xf32>
      tpu.vector_store %arg10[%c0_40, %c0_41], %50 {strides = array<i32>} : memref<8x128xf32, #tpu.memory_space<vmem>>, vector<8x128xf32>,
    } else {
    }
    %c0 = arith.constant 0 : index
    %c0_1 = arith.constant 0 : index
    %c0_2 = arith.constant 0 : index
    %c0_3 = arith.constant 0 : index
    %c0_4 = arith.constant 0 : index
    %3 = vector.load %arg4[%c0, %c0_1, %c0_2, %c0_3, %c0_4] : memref<1x1x1x8x128xbf16, #tpu.memory_space<vmem>>, vector<1x1x1x8x128xbf16>
    %4 = vector.shape_cast %3 : vector<1x1x1x8x128xbf16> to vector<8x128xbf16>
    %c0_5 = arith.constant 0 : index
    %c0_6 = arith.constant 0 : index
    %c0_7 = arith.constant 0 : index
    %c0_8 = arith.constant 0 : index
    %c0_9 = arith.constant 0 : index
    %5 = vector.load %arg5[%c0_5, %c0_6, %c0_7, %c0_8, %c0_9] : memref<1x1x1x8x128xbf16, #tpu.memory_space<vmem>>, vector<1x1x1x8x128xbf16>
    %6 = vector.shape_cast %5 : vector<1x1x1x8x128xbf16> to vector<8x128xbf16>
    %c0_10 = arith.constant 0 : index
    %c0_11 = arith.constant 0 : index
    %c0_12 = arith.constant 0 : index
    %c0_13 = arith.constant 0 : index
    %c0_14 = arith.constant 0 : index
    %7 = vector.load %arg6[%c0_10, %c0_11, %c0_12, %c0_13, %c0_14] : memref<1x1x1x8x128xbf16, #tpu.memory_space<vmem>>, vector<1x1x1x8x128xbf16>
    %8 = vector.shape_cast %7 : vector<1x1x1x8x128xbf16> to vector<8x128xbf16>
    %9 = arith.extf %6 : vector<8x128xbf16> to vector<8x128xf32>
    %10 = arith.extf %4 : vector<8x128xbf16> to vector<8x128xf32>
    %cst = arith.constant dense<0.000000e+00> : vector<128x128xf32>
    %11 = tpu.matmul %9, %10, %cst {dimension_numbers = #tpu.dot_dimension_numbers<[0], [0], [1], [1], [0, 1, 1, 1], [], []>} : vector<8x128xf32>, vector<8x128xf32>, vector<128x128xf32> -> vector<128x128xf32>
    %12 = tpu.iota {dimensions = array<i32: 0>} : vector<128x128xi32>
    %c128_i32 = arith.constant 128 : i32
    %13 = arith.muli %arg3, %c128_i32 : i32
    %14 = vector.broadcast %13 : i32 to vector<128x128xi32>
    %15 = arith.addi %12, %14 : vector<128x128xi32>
    %c16_i32 = arith.constant 16 : i32
    %16 = vector.broadcast %c16_i32 : i32 to vector<128x128xi32>
    %17 = arith.cmpi slt, %15, %16 : vector<128x128xi32>
    %cst_15 = arith.constant -1.000000e+30 : f32
    %18 = vector.broadcast %cst_15 : f32 to vector<128x128xf32>
    %19 = arith.select %17, %11, %18 : vector<128x128xi1>, vector<128x128xf32>
    %c0_16 = arith.constant 0 : index
    %c0_17 = arith.constant 0 : index
    %20 = vector.load %arg8[%c0_16, %c0_17] : memref<1x128xf32, #tpu.memory_space<vmem>>, vector<1x128xf32>
    %cst_18 = arith.constant dense<0xFF800000> : vector<128xf32>
    %21 = vector.multi_reduction <maximumf>, %19, %cst_18 [0] : vector<128x128xf32> to vector<128xf32>
    %22 = vector.shape_cast %21 : vector<128xf32> to vector<1x128xf32>
    %23 = arith.maximumf %20, %22 : vector<1x128xf32>
    %24 = arith.subf %20, %23 : vector<1x128xf32>
    %25 = math.exp %24 : vector<1x128xf32>
    %26 = vector.broadcast %23 : vector<1x128xf32> to vector<128x128xf32>
    %27 = arith.subf %19, %26 : vector<128x128xf32>
    %28 = math.exp %27 : vector<128x128xf32>
    %c0_19 = arith.constant 0 : index
    %c0_20 = arith.constant 0 : index
    %29 = vector.load %arg9[%c0_19, %c0_20] : memref<1x128xf32, #tpu.memory_space<vmem>>, vector<1x128xf32>
    %30 = arith.mulf %25, %29 : vector<1x128xf32>
    %cst_21 = arith.constant dense<0.000000e+00> : vector<128xf32>
    %31 = vector.multi_reduction <add>, %28, %cst_21 [0] : vector<128x128xf32> to vector<128xf32>
    %32 = vector.shape_cast %31 : vector<128xf32> to vector<1x128xf32>
    %33 = arith.addf %30, %32 : vector<1x128xf32>
    %c0_22 = arith.constant 0 : index
    %c0_23 = arith.constant 0 : index
    %34 = vector.load %arg9[%c0_22, %c0_23] : memref<1x128xf32, #tpu.memory_space<vmem>>, vector<1x128xf32>
    tpu.vector_store %arg9[%c0_22, %c0_23], %33 {strides = array<i32>} : memref<1x128xf32, #tpu.memory_space<vmem>>, vector<1x128xf32>,
    %c0_24 = arith.constant 0 : index
    %c0_25 = arith.constant 0 : index
    %35 = vector.load %arg10[%c0_24, %c0_25] : memref<8x128xf32, #tpu.memory_space<vmem>>, vector<8x128xf32>
    %36 = vector.broadcast %25 : vector<1x128xf32> to vector<8x128xf32>
    %37 = arith.mulf %36, %35 : vector<8x128xf32>
    %38 = arith.truncf %28 : vector<128x128xf32> to vector<128x128xbf16>
    %cst_26 = arith.constant dense<0.000000e+00> : vector<8x128xf32>
    %39 = tpu.matmul %8, %38, %cst_26 {dimension_numbers = #tpu.dot_dimension_numbers<[1], [0], [0], [1], [0, 0, 1, 1], [], []>} : vector<8x128xbf16>, vector<128x128xbf16>, vector<8x128xf32> -> vector<8x128xf32>
    %40 = arith.addf %37, %39 : vector<8x128xf32>
    %c0_27 = arith.constant 0 : index
    %c0_28 = arith.constant 0 : index
    %41 = vector.load %arg10[%c0_27, %c0_28] : memref<8x128xf32, #tpu.memory_space<vmem>>, vector<8x128xf32>
    tpu.vector_store %arg10[%c0_27, %c0_28], %40 {strides = array<i32>} : memref<8x128xf32, #tpu.memory_space<vmem>>, vector<8x128xf32>,
    %c0_29 = arith.constant 0 : index
    %c0_30 = arith.constant 0 : index
    %42 = vector.load %arg8[%c0_29, %c0_30] : memref<1x128xf32, #tpu.memory_space<vmem>>, vector<1x128xf32>
    tpu.vector_store %arg8[%c0_29, %c0_30], %23 {strides = array<i32>} : memref<1x128xf32, #tpu.memory_space<vmem>>, vector<1x128xf32>,
    %c0_i32_31 = arith.constant 0 : i32
    %43 = arith.cmpi eq, %arg3, %c0_i32_31 : i32
    %44 = arith.extui %43 : i1 to i32
    %c0_i32_32 = arith.constant 0 : i32
    %45 = arith.cmpi ne, %44, %c0_i32_32 : i32
    scf.if %45 {
      %c0_33 = arith.constant 0 : index
      %c0_34 = arith.constant 0 : index
      %46 = vector.load %arg9[%c0_33, %c0_34] : memref<1x128xf32, #tpu.memory_space<vmem>>, vector<1x128xf32>
      %47 = tpu.reciprocal %46 : vector<1x128xf32> -> vector<1x128xf32>
      %c0_35 = arith.constant 0 : index
      %c0_36 = arith.constant 0 : index
      %48 = vector.load %arg10[%c0_35, %c0_36] : memref<8x128xf32, #tpu.memory_space<vmem>>, vector<8x128xf32>
      %49 = vector.broadcast %47 : vector<1x128xf32> to vector<8x128xf32>
      %50 = arith.mulf %48, %49 : vector<8x128xf32>
      %51 = arith.truncf %50 : vector<8x128xf32> to vector<8x128xbf16>
      %c0_37 = arith.constant 0 : index
      %c0_38 = arith.constant 0 : index
      %c0_39 = arith.constant 0 : index
      %c0_40 = arith.constant 0 : index
      %52 = vector.load %arg7[%c0_37, %c0_38, %c0_39, %c0_40] : memref<1x1x8x128xbf16, #tpu.memory_space<vmem>>, vector<1x1x8x128xbf16>
      %53 = vector.shape_cast %52 : vector<1x1x8x128xbf16> to vector<8x128xbf16>
      %54 = vector.shape_cast %51 : vector<8x128xbf16> to vector<1x1x8x128xbf16>
      tpu.vector_store %arg7[%c0_37, %c0_38, %c0_39, %c0_40], %54 {strides = array<i32>} : memref<1x1x8x128xbf16, #tpu.memory_space<vmem>>, vector<1x1x8x128xbf16>,
    } else {
    }
    return
  }
  func.func @transform_0(%arg0: i32, %arg1: i32, %arg2: i32, %arg3: i32) -> (i32, i32, i32, i32, i32) {
    %c0_i32 = arith.constant 0 : i32
    %c0_i32_0 = arith.constant 0 : i32
    %c0_i32_1 = arith.constant 0 : i32
    return %arg0, %c0_i32, %arg1, %c0_i32_0, %arg2 : i32, i32, i32, i32, i32
  }
  func.func @transform_1(%arg0: i32, %arg1: i32, %arg2: i32, %arg3: i32) -> (i32, i32, i32, i32, i32) {
    %c0_i32 = arith.constant 0 : i32
    %c0_i32_0 = arith.constant 0 : i32
    %c0_i32_1 = arith.constant 0 : i32
    return %arg0, %c0_i32, %arg1, %c0_i32_0, %arg3 : i32, i32, i32, i32, i32
  }
  func.func @transform_2(%arg0: i32, %arg1: i32, %arg2: i32, %arg3: i32) -> (i32, i32, i32, i32, i32) {
    %c1_i32 = arith.constant 1 : i32
    %c0_i32 = arith.constant 0 : i32
    %c0_i32_0 = arith.constant 0 : i32
    return %arg0, %c1_i32, %arg1, %c0_i32, %arg3 : i32, i32, i32, i32, i32
  }
  func.func @transform_3(%arg0: i32, %arg1: i32, %arg2: i32, %arg3: i32) -> (i32, i32, i32, i32) {
    %c0_i32 = arith.constant 0 : i32
    %c0_i32_0 = arith.constant 0 : i32
    return %arg0, %arg1, %c0_i32, %arg2 : i32, i32, i32, i32
  }
}

module attributes {stable_mosaic.version = 11 : i64} {
  func.func @_pointwise_conv_kernel(%arg0: i32, %arg1: i32, %arg2: memref<1x32x128xf32, #tpu.memory_space<vmem>>, %arg3: memref<32x32xbf16, #tpu.memory_space<vmem>>, %arg4: memref<32x1xf32, #tpu.memory_space<vmem>>, %arg5: memref<1x32x128xbf16, #tpu.memory_space<vmem>>) attributes {dimension_semantics = [#tpu.dimension_semantics<parallel>, #tpu.dimension_semantics<parallel>], iteration_bounds = array<i64: 2, 1>, scalar_prefetch = 0 : i64, scratch_operands = 0 : i64, tpu.core_type = #tpu.core_type<tc>, window_params = [{transform_indices = @transform_0, window_bounds = array<i64: 1, 32, 128>}, {pipeline_mode = #tpu.pipeline_mode<synchronous>, transform_indices = @transform_1, window_bounds = array<i64: 32, 32>}, {pipeline_mode = #tpu.pipeline_mode<synchronous>, transform_indices = @transform_2, window_bounds = array<i64: 32, 1>}, {transform_indices = @transform_3, window_bounds = array<i64: 1, 32, 128>}]} {
    %c0 = arith.constant 0 : index
    %c0_0 = arith.constant 0 : index
    %c0_1 = arith.constant 0 : index
    %0 = vector.load %arg2[%c0, %c0_0, %c0_1] : memref<1x32x128xf32, #tpu.memory_space<vmem>>, vector<1x32x128xf32>
    %1 = vector.shape_cast %0 : vector<1x32x128xf32> to vector<32x128xf32>
    %2 = arith.truncf %1 : vector<32x128xf32> to vector<32x128xbf16>
    %c0_2 = arith.constant 0 : index
    %c0_3 = arith.constant 0 : index
    %3 = vector.load %arg3[%c0_2, %c0_3] : memref<32x32xbf16, #tpu.memory_space<vmem>>, vector<32x32xbf16>
    %cst = arith.constant dense<0.000000e+00> : vector<32x128xf32>
    %4 = tpu.matmul %3, %2, %cst {dimension_numbers = #tpu.dot_dimension_numbers<[1], [0], [0], [1], [0, 0, 1, 1], [], []>} : vector<32x32xbf16>, vector<32x128xbf16>, vector<32x128xf32> -> vector<32x128xf32>
    %c0_4 = arith.constant 0 : index
    %c0_5 = arith.constant 0 : index
    %5 = vector.load %arg4[%c0_4, %c0_5] : memref<32x1xf32, #tpu.memory_space<vmem>>, vector<32x1xf32>
    %6 = vector.broadcast %5 : vector<32x1xf32> to vector<32x128xf32>
    %7 = arith.addf %4, %6 : vector<32x128xf32>
    %8 = arith.truncf %7 : vector<32x128xf32> to vector<32x128xbf16>
    %c0_6 = arith.constant 0 : index
    %c0_7 = arith.constant 0 : index
    %c0_8 = arith.constant 0 : index
    %9 = vector.load %arg5[%c0_6, %c0_7, %c0_8] : memref<1x32x128xbf16, #tpu.memory_space<vmem>>, vector<1x32x128xbf16>
    %10 = vector.shape_cast %9 : vector<1x32x128xbf16> to vector<32x128xbf16>
    %11 = vector.shape_cast %8 : vector<32x128xbf16> to vector<1x32x128xbf16>
    tpu.vector_store %arg5[%c0_6, %c0_7, %c0_8], %11 {strides = array<i32>} : memref<1x32x128xbf16, #tpu.memory_space<vmem>>, vector<1x32x128xbf16>,
    return
  }
  func.func @transform_0(%arg0: i32, %arg1: i32) -> (i32, i32, i32) {
    %c0_i32 = arith.constant 0 : i32
    %c0_i32_0 = arith.constant 0 : i32
    return %arg0, %c0_i32, %arg1 : i32, i32, i32
  }
  func.func @transform_1(%arg0: i32, %arg1: i32) -> (i32, i32) {
    %c0_i32 = arith.constant 0 : i32
    %c0_i32_0 = arith.constant 0 : i32
    %c0_i32_1 = arith.constant 0 : i32
    return %c0_i32, %c0_i32_0 : i32, i32
  }
  func.func @transform_2(%arg0: i32, %arg1: i32) -> (i32, i32) {
    %c0_i32 = arith.constant 0 : i32
    %c0_i32_0 = arith.constant 0 : i32
    %c0_i32_1 = arith.constant 0 : i32
    return %c0_i32, %c0_i32_0 : i32, i32
  }
  func.func @transform_3(%arg0: i32, %arg1: i32) -> (i32, i32, i32) {
    %c0_i32 = arith.constant 0 : i32
    %c0_i32_0 = arith.constant 0 : i32
    return %arg0, %c0_i32, %arg1 : i32, i32, i32
  }
}

module attributes {stable_mosaic.version = 11 : i64} {
  func.func @_pointwise_conv_kernel(%arg0: i32, %arg1: i32, %arg2: memref<1x32x128xbf16, #tpu.memory_space<vmem>>, %arg3: memref<32x32xbf16, #tpu.memory_space<vmem>>, %arg4: memref<32x1xf32, #tpu.memory_space<vmem>>, %arg5: memref<1x32x128xf32, #tpu.memory_space<vmem>>) attributes {dimension_semantics = [#tpu.dimension_semantics<parallel>, #tpu.dimension_semantics<parallel>], iteration_bounds = array<i64: 2, 1>, scalar_prefetch = 0 : i64, scratch_operands = 0 : i64, tpu.core_type = #tpu.core_type<tc>, window_params = [{transform_indices = @transform_0, window_bounds = array<i64: 1, 32, 128>}, {pipeline_mode = #tpu.pipeline_mode<synchronous>, transform_indices = @transform_1, window_bounds = array<i64: 32, 32>}, {pipeline_mode = #tpu.pipeline_mode<synchronous>, transform_indices = @transform_2, window_bounds = array<i64: 32, 1>}, {transform_indices = @transform_3, window_bounds = array<i64: 1, 32, 128>}]} {
    %c0 = arith.constant 0 : index
    %c0_0 = arith.constant 0 : index
    %c0_1 = arith.constant 0 : index
    %0 = vector.load %arg2[%c0, %c0_0, %c0_1] : memref<1x32x128xbf16, #tpu.memory_space<vmem>>, vector<1x32x128xbf16>
    %1 = vector.shape_cast %0 : vector<1x32x128xbf16> to vector<32x128xbf16>
    %c0_2 = arith.constant 0 : index
    %c0_3 = arith.constant 0 : index
    %2 = vector.load %arg3[%c0_2, %c0_3] : memref<32x32xbf16, #tpu.memory_space<vmem>>, vector<32x32xbf16>
    %cst = arith.constant dense<0.000000e+00> : vector<32x128xf32>
    %3 = tpu.matmul %2, %1, %cst {dimension_numbers = #tpu.dot_dimension_numbers<[1], [0], [0], [1], [0, 0, 1, 1], [], []>} : vector<32x32xbf16>, vector<32x128xbf16>, vector<32x128xf32> -> vector<32x128xf32>
    %c0_4 = arith.constant 0 : index
    %c0_5 = arith.constant 0 : index
    %4 = vector.load %arg4[%c0_4, %c0_5] : memref<32x1xf32, #tpu.memory_space<vmem>>, vector<32x1xf32>
    %5 = vector.broadcast %4 : vector<32x1xf32> to vector<32x128xf32>
    %6 = arith.addf %3, %5 : vector<32x128xf32>
    %c0_6 = arith.constant 0 : index
    %c0_7 = arith.constant 0 : index
    %c0_8 = arith.constant 0 : index
    %7 = vector.load %arg5[%c0_6, %c0_7, %c0_8] : memref<1x32x128xf32, #tpu.memory_space<vmem>>, vector<1x32x128xf32>
    %8 = vector.shape_cast %7 : vector<1x32x128xf32> to vector<32x128xf32>
    %9 = vector.shape_cast %6 : vector<32x128xf32> to vector<1x32x128xf32>
    tpu.vector_store %arg5[%c0_6, %c0_7, %c0_8], %9 {strides = array<i32>} : memref<1x32x128xf32, #tpu.memory_space<vmem>>, vector<1x32x128xf32>,
    return
  }
  func.func @transform_0(%arg0: i32, %arg1: i32) -> (i32, i32, i32) {
    %c0_i32 = arith.constant 0 : i32
    %c0_i32_0 = arith.constant 0 : i32
    return %arg0, %c0_i32, %arg1 : i32, i32, i32
  }
  func.func @transform_1(%arg0: i32, %arg1: i32) -> (i32, i32) {
    %c0_i32 = arith.constant 0 : i32
    %c0_i32_0 = arith.constant 0 : i32
    %c0_i32_1 = arith.constant 0 : i32
    return %c0_i32, %c0_i32_0 : i32, i32
  }
  func.func @transform_2(%arg0: i32, %arg1: i32) -> (i32, i32) {
    %c0_i32 = arith.constant 0 : i32
    %c0_i32_0 = arith.constant 0 : i32
    %c0_i32_1 = arith.constant 0 : i32
    return %c0_i32, %c0_i32_0 : i32, i32
  }
  func.func @transform_3(%arg0: i32, %arg1: i32) -> (i32, i32, i32) {
    %c0_i32 = arith.constant 0 : i32
    %c0_i32_0 = arith.constant 0 : i32
    return %arg0, %c0_i32, %arg1 : i32, i32, i32
  }
}

</mosaic_0001>

<llo_original>
// kernel: _lambda_.4
$region0: #{_lambda_.4}
  #allocation0 [shape = 'u32[]', space=smem, size = 0x4, offset = 0x4, fixed_abs, tag = 'smem constant byte address 0x4 - core index']
  #allocation1 [shape = 'u32[144,128]{1,0:T(1,128)}', space=vmem, size = 0x12000, scoped, tag = 'internal scratch']
  %s0 = inlined_call_operand.vmem [shape: f32[2,32,128], index: 0, kind: input, shape index: {}]
  %s1 = inlined_call_operand.vmem [shape: bf16[32,32], index: 1, kind: input, shape index: {}]
  %s2 = inlined_call_operand.vmem [shape: f32[32,1], index: 2, kind: input, shape index: {}]
  %s3 = inlined_call_operand.vmem [shape: bf16[2,32,128], index: 3, kind: output, shape index: {}]
  %s4 = sld [smem:[#allocation0]]
  $region45: #{_lambda_.4} parent=0
    _
  %s6 = ssub.s32 1, %s4
  %s7 = scalar_select 0, %s6, %s4
  loop: start=0, step=1, limit=4
  $region2: #{_lambda_.4} parent=0 // loop_pre_header
    _
  $region3: #{_lambda_.4} parent=0 // loop_header
    %s9 = sphi 0, %s13
    %p10 = scmp.ge.s32.totalorder %s9, 4
    %s16 = sphi 0, %s28
    %s17 = sphi 0, %s24
    %s18 = sphi 0, %s16
    %s19 = sphi 0, %s17
    %s20 = sphi 0, %s18
    %s21 = sphi 0, %s19
    %s33 = sphi 0, %s35
    %s36 = sphi 0, %s33
    %s37 = sphi 0, %s36
    %s53 = sphi 0, %s37
    %s57 = sphi 0, %s57
    %s59 = sphi 0, %s57
    %s60 = sphi 0, %s59
    %s74 = sphi 0, %s60
    %s78 = sphi 0, %s78
    %s80 = sphi 0, %s78
    %s81 = sphi 0, %s80
    %s95 = sphi 0, %s81
    %s103 = sphi 0, %s105
    %s106 = sphi 0, %s103
    %s107 = sphi 0, %s106
    %s123 = sphi 0, %s107
  $region4: #{_lambda_.4} parent=0 // loop_header_branch
    %12 = sbr.rel (%p10) target = $region8
  $region5: #{_lambda_.4} parent=0 // loop_body
    %s14 = ssub.s32 %s9, 1
    %s15 = ssub.s32 %s9, 2
    %s22 = sadd.s32 1, %s17
    %p23 = scmp.ge.s32.totalorder %s22, 1
    %s24 = scalar_select %p23, 0, %s22
    %s25 = sadd.s32 1, %s16
    %s26 = scalar_select %p23, %s25, %s16
    %p27 = scmp.ge.s32.totalorder %s26, 2
    %s28 = scalar_select %p27, 0, %s26
    %s29 = ssub.s32 %s16, %s28
    %s30 = ssub.s32 %s17, %s24
    %s31 = sor.u32 %s29, %s30
    %p32 = scmp.eq.s32.totalorder %s31, 0
    %s34 = sadd.s32 %s33, 1
    %s35 = scalar_select %p32, %s33, %s34
    %p38 = pneg %p32
    %p39 = scmp.eq.s32.totalorder %s9, 1
    %p40 = por %p38, %p39
    %p41 = scmp.ne.s32.totalorder %s33, %s36
    %p42 = scmp.eq.s32.totalorder %s9, 0
    %p43 = por %p41, %p42
    %p44 = scmp.ne.s32.totalorder %s33, %s36
    %p45 = scmp.eq.s32.totalorder %s14, 1
    %p46 = por %p44, %p45
    %p47 = scmp.ne.s32.totalorder %s36, %s37
    %p48 = scmp.eq.s32.totalorder %s14, 0
    %p49 = por %p47, %p48
    %p50 = scmp.ne.s32.totalorder %s36, %s37
    %p51 = scmp.eq.s32.totalorder %s15, 1
    %p52 = por %p50, %p51
    %p54 = scmp.ne.s32.totalorder %s37, %s53
    %p55 = scmp.eq.s32.totalorder %s15, 0
    %p56 = por %p54, %p55
    %s58 = sadd.s32 %s57, 1
    %p61 = scmp.eq.s32.totalorder %s9, 1
    %p62 = scmp.ne.s32.totalorder %s57, %s59
    %p63 = scmp.eq.s32.totalorder %s9, 0
    %p64 = por %p62, %p63
    %p65 = scmp.ne.s32.totalorder %s57, %s59
    %p66 = scmp.eq.s32.totalorder %s14, 1
    %p67 = por %p65, %p66
    %p68 = scmp.ne.s32.totalorder %s59, %s60
    %p69 = scmp.eq.s32.totalorder %s14, 0
    %p70 = por %p68, %p69
    %p71 = scmp.ne.s32.totalorder %s59, %s60
    %p72 = scmp.eq.s32.totalorder %s15, 1
    %p73 = por %p71, %p72
    %p75 = scmp.ne.s32.totalorder %s60, %s74
    %p76 = scmp.eq.s32.totalorder %s15, 0
    %p77 = por %p75, %p76
    %s79 = sadd.s32 %s78, 1
    %p82 = scmp.eq.s32.totalorder %s9, 1
    %p83 = scmp.ne.s32.totalorder %s78, %s80
    %p84 = scmp.eq.s32.totalorder %s9, 0
    %p85 = por %p83, %p84
    %p86 = scmp.ne.s32.totalorder %s78, %s80
    %p87 = scmp.eq.s32.totalorder %s14, 1
    %p88 = por %p86, %p87
    %p89 = scmp.ne.s32.totalorder %s80, %s81
    %p90 = scmp.eq.s32.totalorder %s14, 0
    %p91 = por %p89, %p90
    %p92 = scmp.ne.s32.totalorder %s80, %s81
    %p93 = scmp.eq.s32.totalorder %s15, 1
    %p94 = por %p92, %p93
    %p96 = scmp.ne.s32.totalorder %s81, %s95
    %p97 = scmp.eq.s32.totalorder %s15, 0
    %p98 = por %p96, %p97
    %s99 = ssub.s32 %s16, %s28
    %s100 = ssub.s32 %s17, %s24
    %s101 = sor.u32 %s99, %s100
    %p102 = scmp.eq.s32.totalorder %s101, 0
    %s104 = sadd.s32 %s103, 1
    %s105 = scalar_select %p102, %s103, %s104
    %p108 = pneg %p102
    %p109 = scmp.eq.s32.totalorder %s9, 1
    %p110 = por %p108, %p109
    %p111 = scmp.ne.s32.totalorder %s103, %s106
    %p112 = scmp.eq.s32.totalorder %s9, 0
    %p113 = por %p111, %p112
    %p114 = scmp.ne.s32.totalorder %s103, %s106
    %p115 = scmp.eq.s32.totalorder %s14, 1
    %p116 = por %p114, %p115
    %p117 = scmp.ne.s32.totalorder %s106, %s107
    %p118 = scmp.eq.s32.totalorder %s14, 0
    %p119 = por %p117, %p118
    %p120 = scmp.ne.s32.totalorder %s106, %s107
    %p121 = scmp.eq.s32.totalorder %s15, 1
    %p122 = por %p120, %p121
    %p124 = scmp.ne.s32.totalorder %s107, %s123
    %p125 = scmp.eq.s32.totalorder %s15, 0
    %p126 = por %p124, %p125
    %p127 = scmp.le.s32.totalorder 1, %s9
    %p128 = scmp.lt.s32.totalorder %s9, 3
    %p129 = pnand %p127, %p128
    %p130 = pneg %p129
    // Predicated region
    $region9: #{_lambda_.4} parent=5 // pred_check
      _
    $region10: #{_lambda_.4} parent=5 // pred_check_branch
      %132 = sbr.rel (%p129) target = $region12
    $region11: #{_lambda_.4} parent=5 // pred_region
      %s133 = ssub.s32 %s9, 1
      // Predicated region
      $region13: #{_lambda_.4} parent=11 // pred_check
        %p134 = pneg %p70
      $region14: #{_lambda_.4} parent=11 // pred_check_branch
        %136 = sbr.rel (%p134) target = $region16
      $region15: #{_lambda_.4} parent=11 // pred_region
        _
      $region16: #{_lambda_.4} parent=11 // pred_fallthru
        _
      // Predicated region
      $region17: #{_lambda_.4} parent=11 // pred_check
        %p137 = pneg %p91
      $region18: #{_lambda_.4} parent=11 // pred_check_branch
        %139 = sbr.rel (%p137) target = $region20
      $region19: #{_lambda_.4} parent=11 // pred_region
        _
      $region20: #{_lambda_.4} parent=11 // pred_fallthru
        _
    $region12: #{_lambda_.4} parent=5 // pred_fallthru
      _
    %p140 = scmp.lt.s32.totalorder %s9, 2
    // Predicated region
    $region21: #{_lambda_.4} parent=5 // pred_check
      %p141 = pneg %p140
    $region22: #{_lambda_.4} parent=5 // pred_check_branch
      %143 = sbr.rel (%p141) target = $region24
    $region23: #{_lambda_.4} parent=5 // pred_region
      // Predicated region
      $region25: #{_lambda_.4} parent=23 // pred_check
        %p144 = pneg %p43
      $region26: #{_lambda_.4} parent=23 // pred_check_branch
        %146 = sbr.rel (%p144) target = $region28
      $region27: #{_lambda_.4} parent=23 // pred_region
        %p147 = scmp.lt.s32.totalorder %s16, 1
        %s148 = scalar_select %p147, %s16, 1
        %p149 = scmp.lt.s32.totalorder %s17, 0
        %s150 = scalar_select %p149, %s17, 0
        %s151 = smul.addr %s148, 4
        %s152 = sadd.s32 %s150, %s151
        %s153 = smul.addr %s152, 8
        %s154 = scalar_lea.vmem %s0, %s153
      $region28: #{_lambda_.4} parent=23 // pred_fallthru
        _
    $region24: #{_lambda_.4} parent=5 // pred_fallthru
      _
    %p155 = scmp.le.s32.totalorder 1, %s9
    %p156 = scmp.lt.s32.totalorder %s9, 3
    %p157 = pnand %p155, %p156
    %p158 = pneg %p157
    // Predicated region
    $region29: #{_lambda_.4} parent=5 // pred_check
      _
    $region30: #{_lambda_.4} parent=5 // pred_check_branch
      %160 = sbr.rel (%p157) target = $region32
    $region31: #{_lambda_.4} parent=5 // pred_region
      %s161 = ssub.s32 %s9, 1
      %p162 = scmp.lt.s32.totalorder %s18, 1
      %s163 = scalar_select %p162, %s18, 1
      %p164 = scmp.lt.s32.totalorder %s19, 0
      %s165 = scalar_select %p164, %s19, 0
      %s166 = smul.addr %s163, 4
      %s167 = sadd.s32 %s165, %s166
      %s168 = smul.addr %s167, 8
      %s169 = scalar_lea.vmem %s0, %s168
      %p170 = pneg %p49
      %p171 = pneg %p46
      %p172 = pneg %p70
      %p173 = pneg %p67
      %p174 = pneg %p91
      %p175 = pneg %p88
      %p176 = pneg %p119
      %p177 = pneg %p116
      %p178 = scmp.lt.s32.totalorder %s18, 1
      %s179 = scalar_select %p178, %s18, 1
      %p180 = scmp.lt.s32.totalorder %s19, 0
      %s181 = scalar_select %p180, %s19, 0
      %s182 = smul.addr %s179, 4
      %s183 = sadd.s32 %s181, %s182
      %s184 = smul.addr %s183, 4
      %s185 = scalar_lea.vmem %s3, %s184
      %p186 = scmp.lt.s32.totalorder %s18, 1
      %s187 = scalar_select %p186, %s18, 1
      %p188 = scmp.lt.s32.totalorder %s19, 0
      %s189 = scalar_select %p188, %s19, 0
      %s190 = smul.addr %s187, 4
      %s191 = sadd.s32 %s189, %s190
      %s192 = smul.addr %s191, 8
      %s193 = scalar_lea.vmem %s0, %s192
      %p194 = scmp.lt.s32.totalorder %s18, 1
      %s195 = scalar_select %p194, %s18, 1
      %p196 = scmp.lt.s32.totalorder %s19, 0
      %s197 = scalar_select %p196, %s19, 0
      %s198 = smul.addr %s195, 4
      %s199 = sadd.s32 %s197, %s198
      %s200 = smul.addr %s199, 4
      %s201 = scalar_lea.vmem %s3, %s200
      %v203 = vld [vmem:[%s193] sm:$0xff]
      %v204 = vld [vmem:[%s193 + $0x8] sm:$0xff]
      %v205 = vld [vmem:[%s193 + $0x10] sm:$0xff]
      %v206 = vld [vmem:[%s193 + $0x18] sm:$0xff]
      %v207 = vpack.c.bf16 %v204, %v203
      %v208 = vpack.c.bf16 %v206, %v205
      %v209 = vld [vmem:[%s1] sm:$0xf]
      %v210 = vld [vmem:[%s1 + $0x4] sm:$0xf]
      %v211 = vld [vmem:[%s1 + $0x8] sm:$0xf]
      %v212 = vld [vmem:[%s1 + $0xc] sm:$0xf]
      %v213 = vld [vmem:[%s2] sm:$0xff]
      %v214 = vld [vmem:[%s2 + $0x8] sm:$0xff]
      %v215 = vld [vmem:[%s2 + $0x10] sm:$0xff]
      %v216 = vld [vmem:[%s2 + $0x18] sm:$0xff]
      %218 = vset.pattern.permute.xlu0 0
      %219 = vperm.xlu0 %218, %v213
      %v220 = vpop.permute.xlu0 %219
      %223 = vset.pattern.permute.xlu0 0
      %224 = vperm.xlu0 %223, %v214
      %v225 = vpop.permute.xlu0 %224
      %228 = vset.pattern.permute.xlu0 0
      %229 = vperm.xlu0 %228, %v215
      %v230 = vpop.permute.xlu0 %229
      %233 = vset.pattern.permute.xlu0 0
      %234 = vperm.xlu0 %233, %v216
      %v235 = vpop.permute.xlu0 %234
      %v241 = vunpack.c.l.b16 %v209
      %v242 = vunpack.c.l.b16 %v210
      %v243 = vunpack.c.l.b16 %v211
      %v244 = vunpack.c.l.b16 %v212
      %v245 = vpack.c.b16 %v242, %v241
      %v246 = vpack.c.b16 %v244, %v243
      %vm247 = vcmask 261120
      %v249 = vsel %vm247, %v245, 0
      %v252 = vsel %vm247, %v246, 0
      %254 = vmatprep.subr.bf16.mxu0 0
      %255 = vmatpush1.bf16.msra.mxu0 %v207
      %256 = vmatprep.subr.bf16.mxu0 0
      %257 = vmatpush1.bf16.msra.mxu0 %v208
      %258 = vmatprep.subr.bf16.mxu0 0
      %259 = vmatpush1.bf16.msra.mxu0 0
      %260 = vmatprep.subr.bf16.mxu0 0
      %261 = vmatpush1.bf16.msra.mxu0 0
      %262 = vmatprep.subr.bf16.mxu0 0
      %263 = vmatpush1.bf16.msra.mxu0 0
      %264 = vmatprep.subr.bf16.mxu0 0
      %265 = vmatpush1.bf16.msra.mxu0 0
      %266 = vmatprep.subr.bf16.mxu0 0
      %267 = vmatpush1.bf16.msra.mxu0 0
      %268 = vmatprep.subr.bf16.mxu0 0
      %269 = vmatpush1.bf16.msra.mxu0 0
      %270 = vmatprep.subr.bf16.mxu0 0
      %271 = vmatpush1.bf16.msra.mxu0 0
      %272 = vmatprep.subr.bf16.mxu0 0
      %273 = vmatpush1.bf16.msra.mxu0 0
      %274 = vmatprep.subr.bf16.mxu0 0
      %275 = vmatpush1.bf16.msra.mxu0 0
      %276 = vmatprep.subr.bf16.mxu0 0
      %277 = vmatpush1.bf16.msra.mxu0 0
      %278 = vmatprep.subr.bf16.mxu0 0
      %279 = vmatpush1.bf16.msra.mxu0 0
      %280 = vmatprep.subr.bf16.mxu0 0
      %281 = vmatpush1.bf16.msra.mxu0 0
      %282 = vmatprep.subr.bf16.mxu0 0
      %283 = vmatpush1.bf16.msra.mxu0 0
      %284 = vmatprep.subr.bf16.mxu0 0
      %285 = vmatpush1.bf16.msra.mxu0 0
      %286 = vmatprep.mubr.bf16.mxu0 0
      %287 = vmatmul.mubr.bf16.gmra.mrb[0].mxu0 %v249
      %v288 = vpop.f32.mrb[0].mxu0
      %v289 = vadd.f32 %v220, %v288
      %v290 = vpop.f32.mrb[0].mxu0
      %v291 = vpop.f32.mrb[0].mxu0
      %v292 = vadd.f32 %v225, %v291
      %v293 = vpop.f32.mrb[0].mxu0
      %294 = vmatprep.mubr.bf16.mxu0 0
      %295 = vmatmul.mubr.bf16.gmra.mrb[0].mxu0 %v252
      %v296 = vpop.f32.mrb[0].mxu0
      %v297 = vadd.f32 %v230, %v296
      %v298 = vpop.f32.mrb[0].mxu0
      %v299 = vpop.f32.mrb[0].mxu0
      %v300 = vadd.f32 %v235, %v299
      %v301 = vpop.f32.mrb[0].mxu0
      %302 = vdwg.mxu0
      %v303 = vpack.c.bf16 %v292, %v289
      %v304 = vpack.c.bf16 %v300, %v297
      %v307 = vunpack.c.l.b16 %v303
      %v308 = vunpack.c.h.b16 %v303
      %v309 = vunpack.c.l.b16 %v304
      %v310 = vunpack.c.h.b16 %v304
      %v311 = vpack.c.b16 %v307, %v307
      %v312 = vpack.c.b16 %v308, %v308
      %v313 = vpack.c.b16 %v309, %v309
      %v314 = vpack.c.b16 %v310, %v310
      %319 = vst [vmem:[%s201] sm:$0xf] %v311
      %320 = vst [vmem:[%s201 + $0x4] sm:$0xf] %v312
      %321 = vst [vmem:[%s201 + $0x8] sm:$0xf] %v313
      %322 = vst [vmem:[%s201 + $0xc] sm:$0xf] %v314
      %p323 = scmp.lt.s32.totalorder %s18, 1
      %s324 = scalar_select %p323, %s18, 1
      %p325 = scmp.lt.s32.totalorder %s19, 0
      %s326 = scalar_select %p325, %s19, 0
      %s327 = smul.addr %s324, 4
      %s328 = sadd.s32 %s326, %s327
      %s329 = smul.addr %s328, 4
      %s330 = scalar_lea.vmem %s3, %s329
      // Predicated region
      $region33: #{_lambda_.4} parent=31 // pred_check
        %p331 = pneg %p116
      $region34: #{_lambda_.4} parent=31 // pred_check_branch
        %333 = sbr.rel (%p331) target = $region36
      $region35: #{_lambda_.4} parent=31 // pred_region
        _
      $region36: #{_lambda_.4} parent=31 // pred_fallthru
        _
    $region32: #{_lambda_.4} parent=5 // pred_fallthru
      _
    %p334 = scmp.le.s32.totalorder 2, %s9
    // Predicated region
    $region37: #{_lambda_.4} parent=5 // pred_check
      %p335 = pneg %p334
    $region38: #{_lambda_.4} parent=5 // pred_check_branch
      %337 = sbr.rel (%p335) target = $region40
    $region39: #{_lambda_.4} parent=5 // pred_region
      %s338 = ssub.s32 %s9, 2
      // Predicated region
      $region41: #{_lambda_.4} parent=39 // pred_check
        %p339 = pneg %p122
      $region42: #{_lambda_.4} parent=39 // pred_check_branch
        %341 = sbr.rel (%p339) target = $region44
      $region43: #{_lambda_.4} parent=39 // pred_region
        %p342 = scmp.lt.s32.totalorder %s20, 1
        %s343 = scalar_select %p342, %s20, 1
        %p344 = scmp.lt.s32.totalorder %s21, 0
        %s345 = scalar_select %p344, %s21, 0
        %s346 = smul.addr %s343, 4
        %s347 = sadd.s32 %s345, %s346
        %s348 = smul.addr %s347, 4
        %s349 = scalar_lea.vmem %s3, %s348
      $region44: #{_lambda_.4} parent=39 // pred_fallthru
        _
    $region40: #{_lambda_.4} parent=5 // pred_fallthru
      _
  $region6: #{_lambda_.4} parent=0 // loop_footer
    %s13 = sadd.s32 1, %s9
  $region7: #{_lambda_.4} parent=0 // loop_footer_branch
    %8 = sbr.rel target = $region3
  $region8: #{_lambda_.4} parent=0 // loop_exit
    _

// kernel: _lambda_.5
$region0: #{_lambda_.5}
  #allocation0 [shape = 'u32[]', space=smem, size = 0x4, offset = 0x4, fixed_abs, tag = 'smem constant byte address 0x4 - core index']
  #allocation1 [shape = 'u32[144,128]{1,0:T(1,128)}', space=vmem, size = 0x12000, scoped, tag = 'internal scratch']
  %s0 = inlined_call_operand.vmem [shape: f32[2,32,128], index: 0, kind: input, shape index: {}]
  %s1 = inlined_call_operand.vmem [shape: bf16[64,32], index: 1, kind: input, shape index: {}]
  %s2 = inlined_call_operand.vmem [shape: f32[64,1], index: 2, kind: input, shape index: {}]
  %s3 = inlined_call_operand.vmem [shape: bf16[2,64,128], index: 3, kind: output, shape index: {}]
  %s4 = sld [smem:[#allocation0]]
  $region45: #{_lambda_.5} parent=0
    _
  %s6 = ssub.s32 1, %s4
  %s7 = scalar_select 0, %s6, %s4
  loop: start=0, step=1, limit=4
  $region2: #{_lambda_.5} parent=0 // loop_pre_header
    _
  $region3: #{_lambda_.5} parent=0 // loop_header
    %s9 = sphi 0, %s13
    %p10 = scmp.ge.s32.totalorder %s9, 4
    %s16 = sphi 0, %s28
    %s17 = sphi 0, %s24
    %s18 = sphi 0, %s16
    %s19 = sphi 0, %s17
    %s20 = sphi 0, %s18
    %s21 = sphi 0, %s19
    %s33 = sphi 0, %s35
    %s36 = sphi 0, %s33
    %s37 = sphi 0, %s36
    %s53 = sphi 0, %s37
    %s57 = sphi 0, %s57
    %s59 = sphi 0, %s57
    %s60 = sphi 0, %s59
    %s74 = sphi 0, %s60
    %s78 = sphi 0, %s78
    %s80 = sphi 0, %s78
    %s81 = sphi 0, %s80
    %s95 = sphi 0, %s81
    %s103 = sphi 0, %s105
    %s106 = sphi 0, %s103
    %s107 = sphi 0, %s106
    %s123 = sphi 0, %s107
  $region4: #{_lambda_.5} parent=0 // loop_header_branch
    %12 = sbr.rel (%p10) target = $region8
  $region5: #{_lambda_.5} parent=0 // loop_body
    %s14 = ssub.s32 %s9, 1
    %s15 = ssub.s32 %s9, 2
    %s22 = sadd.s32 1, %s17
    %p23 = scmp.ge.s32.totalorder %s22, 1
    %s24 = scalar_select %p23, 0, %s22
    %s25 = sadd.s32 1, %s16
    %s26 = scalar_select %p23, %s25, %s16
    %p27 = scmp.ge.s32.totalorder %s26, 2
    %s28 = scalar_select %p27, 0, %s26
    %s29 = ssub.s32 %s16, %s28
    %s30 = ssub.s32 %s17, %s24
    %s31 = sor.u32 %s29, %s30
    %p32 = scmp.eq.s32.totalorder %s31, 0
    %s34 = sadd.s32 %s33, 1
    %s35 = scalar_select %p32, %s33, %s34
    %p38 = pneg %p32
    %p39 = scmp.eq.s32.totalorder %s9, 1
    %p40 = por %p38, %p39
    %p41 = scmp.ne.s32.totalorder %s33, %s36
    %p42 = scmp.eq.s32.totalorder %s9, 0
    %p43 = por %p41, %p42
    %p44 = scmp.ne.s32.totalorder %s33, %s36
    %p45 = scmp.eq.s32.totalorder %s14, 1
    %p46 = por %p44, %p45
    %p47 = scmp.ne.s32.totalorder %s36, %s37
    %p48 = scmp.eq.s32.totalorder %s14, 0
    %p49 = por %p47, %p48
    %p50 = scmp.ne.s32.totalorder %s36, %s37
    %p51 = scmp.eq.s32.totalorder %s15, 1
    %p52 = por %p50, %p51
    %p54 = scmp.ne.s32.totalorder %s37, %s53
    %p55 = scmp.eq.s32.totalorder %s15, 0
    %p56 = por %p54, %p55
    %s58 = sadd.s32 %s57, 1
    %p61 = scmp.eq.s32.totalorder %s9, 1
    %p62 = scmp.ne.s32.totalorder %s57, %s59
    %p63 = scmp.eq.s32.totalorder %s9, 0
    %p64 = por %p62, %p63
    %p65 = scmp.ne.s32.totalorder %s57, %s59
    %p66 = scmp.eq.s32.totalorder %s14, 1
    %p67 = por %p65, %p66
    %p68 = scmp.ne.s32.totalorder %s59, %s60
    %p69 = scmp.eq.s32.totalorder %s14, 0
    %p70 = por %p68, %p69
    %p71 = scmp.ne.s32.totalorder %s59, %s60
    %p72 = scmp.eq.s32.totalorder %s15, 1
    %p73 = por %p71, %p72
    %p75 = scmp.ne.s32.totalorder %s60, %s74
    %p76 = scmp.eq.s32.totalorder %s15, 0
    %p77 = por %p75, %p76
    %s79 = sadd.s32 %s78, 1
    %p82 = scmp.eq.s32.totalorder %s9, 1
    %p83 = scmp.ne.s32.totalorder %s78, %s80
    %p84 = scmp.eq.s32.totalorder %s9, 0
    %p85 = por %p83, %p84
    %p86 = scmp.ne.s32.totalorder %s78, %s80
    %p87 = scmp.eq.s32.totalorder %s14, 1
    %p88 = por %p86, %p87
    %p89 = scmp.ne.s32.totalorder %s80, %s81
    %p90 = scmp.eq.s32.totalorder %s14, 0
    %p91 = por %p89, %p90
    %p92 = scmp.ne.s32.totalorder %s80, %s81
    %p93 = scmp.eq.s32.totalorder %s15, 1
    %p94 = por %p92, %p93
    %p96 = scmp.ne.s32.totalorder %s81, %s95
    %p97 = scmp.eq.s32.totalorder %s15, 0
    %p98 = por %p96, %p97
    %s99 = ssub.s32 %s16, %s28
    %s100 = ssub.s32 %s17, %s24
    %s101 = sor.u32 %s99, %s100
    %p102 = scmp.eq.s32.totalorder %s101, 0
    %s104 = sadd.s32 %s103, 1
    %s105 = scalar_select %p102, %s103, %s104
    %p108 = pneg %p102
    %p109 = scmp.eq.s32.totalorder %s9, 1
    %p110 = por %p108, %p109
    %p111 = scmp.ne.s32.totalorder %s103, %s106
    %p112 = scmp.eq.s32.totalorder %s9, 0
    %p113 = por %p111, %p112
    %p114 = scmp.ne.s32.totalorder %s103, %s106
    %p115 = scmp.eq.s32.totalorder %s14, 1
    %p116 = por %p114, %p115
    %p117 = scmp.ne.s32.totalorder %s106, %s107
    %p118 = scmp.eq.s32.totalorder %s14, 0
    %p119 = por %p117, %p118
    %p120 = scmp.ne.s32.totalorder %s106, %s107
    %p121 = scmp.eq.s32.totalorder %s15, 1
    %p122 = por %p120, %p121
    %p124 = scmp.ne.s32.totalorder %s107, %s123
    %p125 = scmp.eq.s32.totalorder %s15, 0
    %p126 = por %p124, %p125
    %p127 = scmp.le.s32.totalorder 1, %s9
    %p128 = scmp.lt.s32.totalorder %s9, 3
    %p129 = pnand %p127, %p128
    %p130 = pneg %p129
    // Predicated region
    $region9: #{_lambda_.5} parent=5 // pred_check
      _
    $region10: #{_lambda_.5} parent=5 // pred_check_branch
      %132 = sbr.rel (%p129) target = $region12
    $region11: #{_lambda_.5} parent=5 // pred_region
      %s133 = ssub.s32 %s9, 1
      // Predicated region
      $region13: #{_lambda_.5} parent=11 // pred_check
        %p134 = pneg %p70
      $region14: #{_lambda_.5} parent=11 // pred_check_branch
        %136 = sbr.rel (%p134) target = $region16
      $region15: #{_lambda_.5} parent=11 // pred_region
        _
      $region16: #{_lambda_.5} parent=11 // pred_fallthru
        _
      // Predicated region
      $region17: #{_lambda_.5} parent=11 // pred_check
        %p137 = pneg %p91
      $region18: #{_lambda_.5} parent=11 // pred_check_branch
        %139 = sbr.rel (%p137) target = $region20
      $region19: #{_lambda_.5} parent=11 // pred_region
        _
      $region20: #{_lambda_.5} parent=11 // pred_fallthru
        _
    $region12: #{_lambda_.5} parent=5 // pred_fallthru
      _
    %p140 = scmp.lt.s32.totalorder %s9, 2
    // Predicated region
    $region21: #{_lambda_.5} parent=5 // pred_check
      %p141 = pneg %p140
    $region22: #{_lambda_.5} parent=5 // pred_check_branch
      %143 = sbr.rel (%p141) target = $region24
    $region23: #{_lambda_.5} parent=5 // pred_region
      // Predicated region
      $region25: #{_lambda_.5} parent=23 // pred_check
        %p144 = pneg %p43
      $region26: #{_lambda_.5} parent=23 // pred_check_branch
        %146 = sbr.rel (%p144) target = $region28
      $region27: #{_lambda_.5} parent=23 // pred_region
        %p147 = scmp.lt.s32.totalorder %s16, 1
        %s148 = scalar_select %p147, %s16, 1
        %p149 = scmp.lt.s32.totalorder %s17, 0
        %s150 = scalar_select %p149, %s17, 0
        %s151 = smul.addr %s148, 4
        %s152 = sadd.s32 %s150, %s151
        %s153 = smul.addr %s152, 8
        %s154 = scalar_lea.vmem %s0, %s153
      $region28: #{_lambda_.5} parent=23 // pred_fallthru
        _
    $region24: #{_lambda_.5} parent=5 // pred_fallthru
      _
    %p155 = scmp.le.s32.totalorder 1, %s9
    %p156 = scmp.lt.s32.totalorder %s9, 3
    %p157 = pnand %p155, %p156
    %p158 = pneg %p157
    // Predicated region
    $region29: #{_lambda_.5} parent=5 // pred_check
      _
    $region30: #{_lambda_.5} parent=5 // pred_check_branch
      %160 = sbr.rel (%p157) target = $region32
    $region31: #{_lambda_.5} parent=5 // pred_region
      %s161 = ssub.s32 %s9, 1
      %p162 = scmp.lt.s32.totalorder %s18, 1
      %s163 = scalar_select %p162, %s18, 1
      %p164 = scmp.lt.s32.totalorder %s19, 0
      %s165 = scalar_select %p164, %s19, 0
      %s166 = smul.addr %s163, 4
      %s167 = sadd.s32 %s165, %s166
      %s168 = smul.addr %s167, 8
      %s169 = scalar_lea.vmem %s0, %s168
      %p170 = pneg %p49
      %p171 = pneg %p46
      %p172 = pneg %p70
      %p173 = pneg %p67
      %p174 = pneg %p91
      %p175 = pneg %p88
      %p176 = pneg %p119
      %p177 = pneg %p116
      %p178 = scmp.lt.s32.totalorder %s18, 1
      %s179 = scalar_select %p178, %s18, 1
      %p180 = scmp.lt.s32.totalorder %s19, 0
      %s181 = scalar_select %p180, %s19, 0
      %s182 = smul.addr %s179, 8
      %s183 = sadd.s32 %s181, %s182
      %s184 = smul.addr %s183, 4
      %s185 = scalar_lea.vmem %s3, %s184
      %p186 = scmp.lt.s32.totalorder %s18, 1
      %s187 = scalar_select %p186, %s18, 1
      %p188 = scmp.lt.s32.totalorder %s19, 0
      %s189 = scalar_select %p188, %s19, 0
      %s190 = smul.addr %s187, 4
      %s191 = sadd.s32 %s189, %s190
      %s192 = smul.addr %s191, 8
      %s193 = scalar_lea.vmem %s0, %s192
      %p194 = scmp.lt.s32.totalorder %s18, 1
      %s195 = scalar_select %p194, %s18, 1
      %p196 = scmp.lt.s32.totalorder %s19, 0
      %s197 = scalar_select %p196, %s19, 0
      %s198 = smul.addr %s195, 8
      %s199 = sadd.s32 %s197, %s198
      %s200 = smul.addr %s199, 4
      %s201 = scalar_lea.vmem %s3, %s200
      %v203 = vld [vmem:[%s193] sm:$0xff]
      %v204 = vld [vmem:[%s193 + $0x8] sm:$0xff]
      %v205 = vld [vmem:[%s193 + $0x10] sm:$0xff]
      %v206 = vld [vmem:[%s193 + $0x18] sm:$0xff]
      %v207 = vpack.c.bf16 %v204, %v203
      %v208 = vpack.c.bf16 %v206, %v205
      %v209 = vld [vmem:[%s1] sm:$0xf]
      %v210 = vld [vmem:[%s1 + $0x4] sm:$0xf]
      %v211 = vld [vmem:[%s1 + $0x8] sm:$0xf]
      %v212 = vld [vmem:[%s1 + $0xc] sm:$0xf]
      %v213 = vld [vmem:[%s1 + $0x10] sm:$0xf]
      %v214 = vld [vmem:[%s1 + $0x14] sm:$0xf]
      %v215 = vld [vmem:[%s1 + $0x18] sm:$0xf]
      %v216 = vld [vmem:[%s1 + $0x1c] sm:$0xf]
      %v217 = vld [vmem:[%s2] sm:$0xff]
      %v218 = vld [vmem:[%s2 + $0x8] sm:$0xff]
      %v219 = vld [vmem:[%s2 + $0x10] sm:$0xff]
      %v220 = vld [vmem:[%s2 + $0x18] sm:$0xff]
      %v221 = vld [vmem:[%s2 + $0x20] sm:$0xff]
      %v222 = vld [vmem:[%s2 + $0x28] sm:$0xff]
      %v223 = vld [vmem:[%s2 + $0x30] sm:$0xff]
      %v224 = vld [vmem:[%s2 + $0x38] sm:$0xff]
      %226 = vset.pattern.permute.xlu0 0
      %227 = vperm.xlu0 %226, %v217
      %v228 = vpop.permute.xlu0 %227
      %231 = vset.pattern.permute.xlu0 0
      %232 = vperm.xlu0 %231, %v218
      %v233 = vpop.permute.xlu0 %232
      %236 = vset.pattern.permute.xlu0 0
      %237 = vperm.xlu0 %236, %v219
      %v238 = vpop.permute.xlu0 %237
      %241 = vset.pattern.permute.xlu0 0
      %242 = vperm.xlu0 %241, %v220
      %v243 = vpop.permute.xlu0 %242
      %246 = vset.pattern.permute.xlu0 0
      %247 = vperm.xlu0 %246, %v221
      %v248 = vpop.permute.xlu0 %247
      %251 = vset.pattern.permute.xlu0 0
      %252 = vperm.xlu0 %251, %v222
      %v253 = vpop.permute.xlu0 %252
      %256 = vset.pattern.permute.xlu0 0
      %257 = vperm.xlu0 %256, %v223
      %v258 = vpop.permute.xlu0 %257
      %261 = vset.pattern.permute.xlu0 0
      %262 = vperm.xlu0 %261, %v224
      %v263 = vpop.permute.xlu0 %262
      %v273 = vunpack.c.l.b16 %v209
      %v274 = vunpack.c.l.b16 %v210
      %v275 = vunpack.c.l.b16 %v211
      %v276 = vunpack.c.l.b16 %v212
      %v277 = vunpack.c.l.b16 %v213
      %v278 = vunpack.c.l.b16 %v214
      %v279 = vunpack.c.l.b16 %v215
      %v280 = vunpack.c.l.b16 %v216
      %v281 = vpack.c.b16 %v274, %v273
      %v282 = vpack.c.b16 %v276, %v275
      %v283 = vpack.c.b16 %v278, %v277
      %v284 = vpack.c.b16 %v280, %v279
      %vm285 = vcmask 261120
      %v287 = vsel %vm285, %v281, 0
      %v290 = vsel %vm285, %v282, 0
      %v293 = vsel %vm285, %v283, 0
      %v296 = vsel %vm285, %v284, 0
      %298 = vmatprep.subr.bf16.mxu0 0
      %299 = vmatpush1.bf16.msra.mxu0 %v207
      %300 = vmatprep.subr.bf16.mxu0 0
      %301 = vmatpush1.bf16.msra.mxu0 %v208
      %302 = vmatprep.subr.bf16.mxu0 0
      %303 = vmatpush1.bf16.msra.mxu0 0
      %304 = vmatprep.subr.bf16.mxu0 0
      %305 = vmatpush1.bf16.msra.mxu0 0
      %306 = vmatprep.subr.bf16.mxu0 0
      %307 = vmatpush1.bf16.msra.mxu0 0
      %308 = vmatprep.subr.bf16.mxu0 0
      %309 = vmatpush1.bf16.msra.mxu0 0
      %310 = vmatprep.subr.bf16.mxu0 0
      %311 = vmatpush1.bf16.msra.mxu0 0
      %312 = vmatprep.subr.bf16.mxu0 0
      %313 = vmatpush1.bf16.msra.mxu0 0
      %314 = vmatprep.subr.bf16.mxu0 0
      %315 = vmatpush1.bf16.msra.mxu0 0
      %316 = vmatprep.subr.bf16.mxu0 0
      %317 = vmatpush1.bf16.msra.mxu0 0
      %318 = vmatprep.subr.bf16.mxu0 0
      %319 = vmatpush1.bf16.msra.mxu0 0
      %320 = vmatprep.subr.bf16.mxu0 0
      %321 = vmatpush1.bf16.msra.mxu0 0
      %322 = vmatprep.subr.bf16.mxu0 0
      %323 = vmatpush1.bf16.msra.mxu0 0
      %324 = vmatprep.subr.bf16.mxu0 0
      %325 = vmatpush1.bf16.msra.mxu0 0
      %326 = vmatprep.subr.bf16.mxu0 0
      %327 = vmatpush1.bf16.msra.mxu0 0
      %328 = vmatprep.subr.bf16.mxu0 0
      %329 = vmatpush1.bf16.msra.mxu0 0
      %330 = vmatprep.mubr.bf16.mxu0 0
      %331 = vmatmul.mubr.bf16.gmra.mrb[0].mxu0 %v287
      %v332 = vpop.f32.mrb[0].mxu0
      %v333 = vadd.f32 %v228, %v332
      %v334 = vpop.f32.mrb[0].mxu0
      %v335 = vpop.f32.mrb[0].mxu0
      %v336 = vadd.f32 %v233, %v335
      %v337 = vpop.f32.mrb[0].mxu0
      %338 = vmatprep.mubr.bf16.mxu0 0
      %339 = vmatmul.mubr.bf16.gmra.mrb[0].mxu0 %v290
      %v340 = vpop.f32.mrb[0].mxu0
      %v341 = vadd.f32 %v238, %v340
      %v342 = vpop.f32.mrb[0].mxu0
      %v343 = vpop.f32.mrb[0].mxu0
      %v344 = vadd.f32 %v243, %v343
      %v345 = vpop.f32.mrb[0].mxu0
      %346 = vmatprep.mubr.bf16.mxu0 0
      %347 = vmatmul.mubr.bf16.gmra.mrb[0].mxu0 %v293
      %v348 = vpop.f32.mrb[0].mxu0
      %v349 = vadd.f32 %v248, %v348
      %v350 = vpop.f32.mrb[0].mxu0
      %v351 = vpop.f32.mrb[0].mxu0
      %v352 = vadd.f32 %v253, %v351
      %v353 = vpop.f32.mrb[0].mxu0
      %354 = vmatprep.mubr.bf16.mxu0 0
      %355 = vmatmul.mubr.bf16.gmra.mrb[0].mxu0 %v296
      %v356 = vpop.f32.mrb[0].mxu0
      %v357 = vadd.f32 %v258, %v356
      %v358 = vpop.f32.mrb[0].mxu0
      %v359 = vpop.f32.mrb[0].mxu0
      %v360 = vadd.f32 %v263, %v359
      %v361 = vpop.f32.mrb[0].mxu0
      %362 = vdwg.mxu0
      %v363 = vpack.c.bf16 %v336, %v333
      %v364 = vpack.c.bf16 %v344, %v341
      %v365 = vpack.c.bf16 %v352, %v349
      %v366 = vpack.c.bf16 %v360, %v357
      %v371 = vunpack.c.l.b16 %v363
      %v372 = vunpack.c.h.b16 %v363
      %v373 = vunpack.c.l.b16 %v364
      %v374 = vunpack.c.h.b16 %v364
      %v375 = vunpack.c.l.b16 %v365
      %v376 = vunpack.c.h.b16 %v365
      %v377 = vunpack.c.l.b16 %v366
      %v378 = vunpack.c.h.b16 %v366
      %v379 = vpack.c.b16 %v371, %v371
      %v380 = vpack.c.b16 %v372, %v372
      %v381 = vpack.c.b16 %v373, %v373
      %v382 = vpack.c.b16 %v374, %v374
      %v383 = vpack.c.b16 %v375, %v375
      %v384 = vpack.c.b16 %v376, %v376
      %v385 = vpack.c.b16 %v377, %v377
      %v386 = vpack.c.b16 %v378, %v378
      %395 = vst [vmem:[%s201] sm:$0xf] %v379
      %396 = vst [vmem:[%s201 + $0x4] sm:$0xf] %v380
      %397 = vst [vmem:[%s201 + $0x8] sm:$0xf] %v381
      %398 = vst [vmem:[%s201 + $0xc] sm:$0xf] %v382
      %399 = vst [vmem:[%s201 + $0x10] sm:$0xf] %v383
      %400 = vst [vmem:[%s201 + $0x14] sm:$0xf] %v384
      %401 = vst [vmem:[%s201 + $0x18] sm:$0xf] %v385
      %402 = vst [vmem:[%s201 + $0x1c] sm:$0xf] %v386
      %p403 = scmp.lt.s32.totalorder %s18, 1
      %s404 = scalar_select %p403, %s18, 1
      %p405 = scmp.lt.s32.totalorder %s19, 0
      %s406 = scalar_select %p405, %s19, 0
      %s407 = smul.addr %s404, 8
      %s408 = sadd.s32 %s406, %s407
      %s409 = smul.addr %s408, 4
      %s410 = scalar_lea.vmem %s3, %s409
      // Predicated region
      $region33: #{_lambda_.5} parent=31 // pred_check
        %p411 = pneg %p116
      $region34: #{_lambda_.5} parent=31 // pred_check_branch
        %413 = sbr.rel (%p411) target = $region36
      $region35: #{_lambda_.5} parent=31 // pred_region
        _
      $region36: #{_lambda_.5} parent=31 // pred_fallthru
        _
    $region32: #{_lambda_.5} parent=5 // pred_fallthru
      _
    %p414 = scmp.le.s32.totalorder 2, %s9
    // Predicated region
    $region37: #{_lambda_.5} parent=5 // pred_check
      %p415 = pneg %p414
    $region38: #{_lambda_.5} parent=5 // pred_check_branch
      %417 = sbr.rel (%p415) target = $region40
    $region39: #{_lambda_.5} parent=5 // pred_region
      %s418 = ssub.s32 %s9, 2
      // Predicated region
      $region41: #{_lambda_.5} parent=39 // pred_check
        %p419 = pneg %p122
      $region42: #{_lambda_.5} parent=39 // pred_check_branch
        %421 = sbr.rel (%p419) target = $region44
      $region43: #{_lambda_.5} parent=39 // pred_region
        %p422 = scmp.lt.s32.totalorder %s20, 1
        %s423 = scalar_select %p422, %s20, 1
        %p424 = scmp.lt.s32.totalorder %s21, 0
        %s425 = scalar_select %p424, %s21, 0
        %s426 = smul.addr %s423, 8
        %s427 = sadd.s32 %s425, %s426
        %s428 = smul.addr %s427, 4
        %s429 = scalar_lea.vmem %s3, %s428
      $region44: #{_lambda_.5} parent=39 // pred_fallthru
        _
    $region40: #{_lambda_.5} parent=5 // pred_fallthru
      _
  $region6: #{_lambda_.5} parent=0 // loop_footer
    %s13 = sadd.s32 1, %s9
  $region7: #{_lambda_.5} parent=0 // loop_footer_branch
    %8 = sbr.rel target = $region3
  $region8: #{_lambda_.5} parent=0 // loop_exit
    _

// kernel: _lambda_.7
$region0: #{_lambda_.7}
  #allocation0 [shape = 'u32[]', space=smem, size = 0x4, offset = 0x4, fixed_abs, tag = 'smem constant byte address 0x4 - core index']
  #allocation1 [shape = 'u32[144,128]{1,0:T(1,128)}', space=vmem, size = 0x12000, scoped, tag = 'internal scratch']
  %s0 = inlined_call_operand.vmem [shape: bf16[2,32,128], index: 0, kind: input, shape index: {}]
  %s1 = inlined_call_operand.vmem [shape: bf16[32,32], index: 1, kind: input, shape index: {}]
  %s2 = inlined_call_operand.vmem [shape: f32[32,1], index: 2, kind: input, shape index: {}]
  %s3 = inlined_call_operand.vmem [shape: f32[2,32,128], index: 3, kind: output, shape index: {}]
  %s4 = sld [smem:[#allocation0]]
  $region45: #{_lambda_.7} parent=0
    _
  %s6 = ssub.s32 1, %s4
  %s7 = scalar_select 0, %s6, %s4
  loop: start=0, step=1, limit=4
  $region2: #{_lambda_.7} parent=0 // loop_pre_header
    _
  $region3: #{_lambda_.7} parent=0 // loop_header
    %s9 = sphi 0, %s13
    %p10 = scmp.ge.s32.totalorder %s9, 4
    %s16 = sphi 0, %s28
    %s17 = sphi 0, %s24
    %s18 = sphi 0, %s16
    %s19 = sphi 0, %s17
    %s20 = sphi 0, %s18
    %s21 = sphi 0, %s19
    %s33 = sphi 0, %s35
    %s36 = sphi 0, %s33
    %s37 = sphi 0, %s36
    %s53 = sphi 0, %s37
    %s57 = sphi 0, %s57
    %s59 = sphi 0, %s57
    %s60 = sphi 0, %s59
    %s74 = sphi 0, %s60
    %s78 = sphi 0, %s78
    %s80 = sphi 0, %s78
    %s81 = sphi 0, %s80
    %s95 = sphi 0, %s81
    %s103 = sphi 0, %s105
    %s106 = sphi 0, %s103
    %s107 = sphi 0, %s106
    %s123 = sphi 0, %s107
  $region4: #{_lambda_.7} parent=0 // loop_header_branch
    %12 = sbr.rel (%p10) target = $region8
  $region5: #{_lambda_.7} parent=0 // loop_body
    %s14 = ssub.s32 %s9, 1
    %s15 = ssub.s32 %s9, 2
    %s22 = sadd.s32 1, %s17
    %p23 = scmp.ge.s32.totalorder %s22, 1
    %s24 = scalar_select %p23, 0, %s22
    %s25 = sadd.s32 1, %s16
    %s26 = scalar_select %p23, %s25, %s16
    %p27 = scmp.ge.s32.totalorder %s26, 2
    %s28 = scalar_select %p27, 0, %s26
    %s29 = ssub.s32 %s16, %s28
    %s30 = ssub.s32 %s17, %s24
    %s31 = sor.u32 %s29, %s30
    %p32 = scmp.eq.s32.totalorder %s31, 0
    %s34 = sadd.s32 %s33, 1
    %s35 = scalar_select %p32, %s33, %s34
    %p38 = pneg %p32
    %p39 = scmp.eq.s32.totalorder %s9, 1
    %p40 = por %p38, %p39
    %p41 = scmp.ne.s32.totalorder %s33, %s36
    %p42 = scmp.eq.s32.totalorder %s9, 0
    %p43 = por %p41, %p42
    %p44 = scmp.ne.s32.totalorder %s33, %s36
    %p45 = scmp.eq.s32.totalorder %s14, 1
    %p46 = por %p44, %p45
    %p47 = scmp.ne.s32.totalorder %s36, %s37
    %p48 = scmp.eq.s32.totalorder %s14, 0
    %p49 = por %p47, %p48
    %p50 = scmp.ne.s32.totalorder %s36, %s37
    %p51 = scmp.eq.s32.totalorder %s15, 1
    %p52 = por %p50, %p51
    %p54 = scmp.ne.s32.totalorder %s37, %s53
    %p55 = scmp.eq.s32.totalorder %s15, 0
    %p56 = por %p54, %p55
    %s58 = sadd.s32 %s57, 1
    %p61 = scmp.eq.s32.totalorder %s9, 1
    %p62 = scmp.ne.s32.totalorder %s57, %s59
    %p63 = scmp.eq.s32.totalorder %s9, 0
    %p64 = por %p62, %p63
    %p65 = scmp.ne.s32.totalorder %s57, %s59
    %p66 = scmp.eq.s32.totalorder %s14, 1
    %p67 = por %p65, %p66
    %p68 = scmp.ne.s32.totalorder %s59, %s60
    %p69 = scmp.eq.s32.totalorder %s14, 0
    %p70 = por %p68, %p69
    %p71 = scmp.ne.s32.totalorder %s59, %s60
    %p72 = scmp.eq.s32.totalorder %s15, 1
    %p73 = por %p71, %p72
    %p75 = scmp.ne.s32.totalorder %s60, %s74
    %p76 = scmp.eq.s32.totalorder %s15, 0
    %p77 = por %p75, %p76
    %s79 = sadd.s32 %s78, 1
    %p82 = scmp.eq.s32.totalorder %s9, 1
    %p83 = scmp.ne.s32.totalorder %s78, %s80
    %p84 = scmp.eq.s32.totalorder %s9, 0
    %p85 = por %p83, %p84
    %p86 = scmp.ne.s32.totalorder %s78, %s80
    %p87 = scmp.eq.s32.totalorder %s14, 1
    %p88 = por %p86, %p87
    %p89 = scmp.ne.s32.totalorder %s80, %s81
    %p90 = scmp.eq.s32.totalorder %s14, 0
    %p91 = por %p89, %p90
    %p92 = scmp.ne.s32.totalorder %s80, %s81
    %p93 = scmp.eq.s32.totalorder %s15, 1
    %p94 = por %p92, %p93
    %p96 = scmp.ne.s32.totalorder %s81, %s95
    %p97 = scmp.eq.s32.totalorder %s15, 0
    %p98 = por %p96, %p97
    %s99 = ssub.s32 %s16, %s28
    %s100 = ssub.s32 %s17, %s24
    %s101 = sor.u32 %s99, %s100
    %p102 = scmp.eq.s32.totalorder %s101, 0
    %s104 = sadd.s32 %s103, 1
    %s105 = scalar_select %p102, %s103, %s104
    %p108 = pneg %p102
    %p109 = scmp.eq.s32.totalorder %s9, 1
    %p110 = por %p108, %p109
    %p111 = scmp.ne.s32.totalorder %s103, %s106
    %p112 = scmp.eq.s32.totalorder %s9, 0
    %p113 = por %p111, %p112
    %p114 = scmp.ne.s32.totalorder %s103, %s106
    %p115 = scmp.eq.s32.totalorder %s14, 1
    %p116 = por %p114, %p115
    %p117 = scmp.ne.s32.totalorder %s106, %s107
    %p118 = scmp.eq.s32.totalorder %s14, 0
    %p119 = por %p117, %p118
    %p120 = scmp.ne.s32.totalorder %s106, %s107
    %p121 = scmp.eq.s32.totalorder %s15, 1
    %p122 = por %p120, %p121
    %p124 = scmp.ne.s32.totalorder %s107, %s123
    %p125 = scmp.eq.s32.totalorder %s15, 0
    %p126 = por %p124, %p125
    %p127 = scmp.le.s32.totalorder 1, %s9
    %p128 = scmp.lt.s32.totalorder %s9, 3
    %p129 = pnand %p127, %p128
    %p130 = pneg %p129
    // Predicated region
    $region9: #{_lambda_.7} parent=5 // pred_check
      _
    $region10: #{_lambda_.7} parent=5 // pred_check_branch
      %132 = sbr.rel (%p129) target = $region12
    $region11: #{_lambda_.7} parent=5 // pred_region
      %s133 = ssub.s32 %s9, 1
      // Predicated region
      $region13: #{_lambda_.7} parent=11 // pred_check
        %p134 = pneg %p70
      $region14: #{_lambda_.7} parent=11 // pred_check_branch
        %136 = sbr.rel (%p134) target = $region16
      $region15: #{_lambda_.7} parent=11 // pred_region
        _
      $region16: #{_lambda_.7} parent=11 // pred_fallthru
        _
      // Predicated region
      $region17: #{_lambda_.7} parent=11 // pred_check
        %p137 = pneg %p91
      $region18: #{_lambda_.7} parent=11 // pred_check_branch
        %139 = sbr.rel (%p137) target = $region20
      $region19: #{_lambda_.7} parent=11 // pred_region
        _
      $region20: #{_lambda_.7} parent=11 // pred_fallthru
        _
    $region12: #{_lambda_.7} parent=5 // pred_fallthru
      _
    %p140 = scmp.lt.s32.totalorder %s9, 2
    // Predicated region
    $region21: #{_lambda_.7} parent=5 // pred_check
      %p141 = pneg %p140
    $region22: #{_lambda_.7} parent=5 // pred_check_branch
      %143 = sbr.rel (%p141) target = $region24
    $region23: #{_lambda_.7} parent=5 // pred_region
      // Predicated region
      $region25: #{_lambda_.7} parent=23 // pred_check
        %p144 = pneg %p43
      $region26: #{_lambda_.7} parent=23 // pred_check_branch
        %146 = sbr.rel (%p144) target = $region28
      $region27: #{_lambda_.7} parent=23 // pred_region
        %p147 = scmp.lt.s32.totalorder %s16, 1
        %s148 = scalar_select %p147, %s16, 1
        %p149 = scmp.lt.s32.totalorder %s17, 0
        %s150 = scalar_select %p149, %s17, 0
        %s151 = smul.addr %s148, 4
        %s152 = sadd.s32 %s150, %s151
        %s153 = smul.addr %s152, 4
        %s154 = scalar_lea.vmem %s0, %s153
      $region28: #{_lambda_.7} parent=23 // pred_fallthru
        _
    $region24: #{_lambda_.7} parent=5 // pred_fallthru
      _
    %p155 = scmp.le.s32.totalorder 1, %s9
    %p156 = scmp.lt.s32.totalorder %s9, 3
    %p157 = pnand %p155, %p156
    %p158 = pneg %p157
    // Predicated region
    $region29: #{_lambda_.7} parent=5 // pred_check
      _
    $region30: #{_lambda_.7} parent=5 // pred_check_branch
      %160 = sbr.rel (%p157) target = $region32
    $region31: #{_lambda_.7} parent=5 // pred_region
      %s161 = ssub.s32 %s9, 1
      %p162 = scmp.lt.s32.totalorder %s18, 1
      %s163 = scalar_select %p162, %s18, 1
      %p164 = scmp.lt.s32.totalorder %s19, 0
      %s165 = scalar_select %p164, %s19, 0
      %s166 = smul.addr %s163, 4
      %s167 = sadd.s32 %s165, %s166
      %s168 = smul.addr %s167, 4
      %s169 = scalar_lea.vmem %s0, %s168
      %p170 = pneg %p49
      %p171 = pneg %p46
      %p172 = pneg %p70
      %p173 = pneg %p67
      %p174 = pneg %p91
      %p175 = pneg %p88
      %p176 = pneg %p119
      %p177 = pneg %p116
      %p178 = scmp.lt.s32.totalorder %s18, 1
      %s179 = scalar_select %p178, %s18, 1
      %p180 = scmp.lt.s32.totalorder %s19, 0
      %s181 = scalar_select %p180, %s19, 0
      %s182 = smul.addr %s179, 4
      %s183 = sadd.s32 %s181, %s182
      %s184 = smul.addr %s183, 8
      %s185 = scalar_lea.vmem %s3, %s184
      %p186 = scmp.lt.s32.totalorder %s18, 1
      %s187 = scalar_select %p186, %s18, 1
      %p188 = scmp.lt.s32.totalorder %s19, 0
      %s189 = scalar_select %p188, %s19, 0
      %s190 = smul.addr %s187, 4
      %s191 = sadd.s32 %s189, %s190
      %s192 = smul.addr %s191, 4
      %s193 = scalar_lea.vmem %s0, %s192
      %p194 = scmp.lt.s32.totalorder %s18, 1
      %s195 = scalar_select %p194, %s18, 1
      %p196 = scmp.lt.s32.totalorder %s19, 0
      %s197 = scalar_select %p196, %s19, 0
      %s198 = smul.addr %s195, 4
      %s199 = sadd.s32 %s197, %s198
      %s200 = smul.addr %s199, 8
      %s201 = scalar_lea.vmem %s3, %s200
      %v203 = vld [vmem:[%s193] sm:$0xf]
      %v204 = vld [vmem:[%s193 + $0x4] sm:$0xf]
      %v205 = vld [vmem:[%s193 + $0x8] sm:$0xf]
      %v206 = vld [vmem:[%s193 + $0xc] sm:$0xf]
      %v207 = vld [vmem:[%s1] sm:$0xf]
      %v208 = vld [vmem:[%s1 + $0x4] sm:$0xf]
      %v209 = vld [vmem:[%s1 + $0x8] sm:$0xf]
      %v210 = vld [vmem:[%s1 + $0xc] sm:$0xf]
      %v211 = vld [vmem:[%s2] sm:$0xff]
      %v212 = vld [vmem:[%s2 + $0x8] sm:$0xff]
      %v213 = vld [vmem:[%s2 + $0x10] sm:$0xff]
      %v214 = vld [vmem:[%s2 + $0x18] sm:$0xff]
      %216 = vset.pattern.permute.xlu0 0
      %217 = vperm.xlu0 %216, %v211
      %v218 = vpop.permute.xlu0 %217
      %221 = vset.pattern.permute.xlu0 0
      %222 = vperm.xlu0 %221, %v212
      %v223 = vpop.permute.xlu0 %222
      %226 = vset.pattern.permute.xlu0 0
      %227 = vperm.xlu0 %226, %v213
      %v228 = vpop.permute.xlu0 %227
      %231 = vset.pattern.permute.xlu0 0
      %232 = vperm.xlu0 %231, %v214
      %v233 = vpop.permute.xlu0 %232
      %v239 = vunpack.c.l.b16 %v207
      %v240 = vunpack.c.l.b16 %v208
      %v241 = vunpack.c.l.b16 %v209
      %v242 = vunpack.c.l.b16 %v210
      %v243 = vpack.c.b16 %v240, %v239
      %v244 = vpack.c.b16 %v242, %v241
      %v249 = vunpack.c.l.b16 %v203
      %v250 = vunpack.c.l.b16 %v204
      %v251 = vunpack.c.l.b16 %v205
      %v252 = vunpack.c.l.b16 %v206
      %v253 = vpack.c.b16 %v250, %v249
      %v254 = vpack.c.b16 %v252, %v251
      %vm257 = vcmask 261120
      %v259 = vsel %vm257, %v243, 0
      %v262 = vsel %vm257, %v244, 0
      %264 = vmatprep.subr.bf16.mxu0 0
      %265 = vmatpush1.bf16.msra.mxu0 %v253
      %266 = vmatprep.subr.bf16.mxu0 0
      %267 = vmatpush1.bf16.msra.mxu0 %v254
      %268 = vmatprep.subr.bf16.mxu0 0
      %269 = vmatpush1.bf16.msra.mxu0 0
      %270 = vmatprep.subr.bf16.mxu0 0
      %271 = vmatpush1.bf16.msra.mxu0 0
      %272 = vmatprep.subr.bf16.mxu0 0
      %273 = vmatpush1.bf16.msra.mxu0 0
      %274 = vmatprep.subr.bf16.mxu0 0
      %275 = vmatpush1.bf16.msra.mxu0 0
      %276 = vmatprep.subr.bf16.mxu0 0
      %277 = vmatpush1.bf16.msra.mxu0 0
      %278 = vmatprep.subr.bf16.mxu0 0
      %279 = vmatpush1.bf16.msra.mxu0 0
      %280 = vmatprep.subr.bf16.mxu0 0
      %281 = vmatpush1.bf16.msra.mxu0 0
      %282 = vmatprep.subr.bf16.mxu0 0
      %283 = vmatpush1.bf16.msra.mxu0 0
      %284 = vmatprep.subr.bf16.mxu0 0
      %285 = vmatpush1.bf16.msra.mxu0 0
      %286 = vmatprep.subr.bf16.mxu0 0
      %287 = vmatpush1.bf16.msra.mxu0 0
      %288 = vmatprep.subr.bf16.mxu0 0
      %289 = vmatpush1.bf16.msra.mxu0 0
      %290 = vmatprep.subr.bf16.mxu0 0
      %291 = vmatpush1.bf16.msra.mxu0 0
      %292 = vmatprep.subr.bf16.mxu0 0
      %293 = vmatpush1.bf16.msra.mxu0 0
      %294 = vmatprep.subr.bf16.mxu0 0
      %295 = vmatpush1.bf16.msra.mxu0 0
      %296 = vmatprep.mubr.bf16.mxu0 0
      %297 = vmatmul.mubr.bf16.gmra.mrb[0].mxu0 %v259
      %v298 = vpop.f32.mrb[0].mxu0
      %v299 = vadd.f32 %v218, %v298
      %v300 = vpop.f32.mrb[0].mxu0
      %v301 = vpop.f32.mrb[0].mxu0
      %v302 = vadd.f32 %v223, %v301
      %v303 = vpop.f32.mrb[0].mxu0
      %304 = vmatprep.mubr.bf16.mxu0 0
      %305 = vmatmul.mubr.bf16.gmra.mrb[0].mxu0 %v262
      %v306 = vpop.f32.mrb[0].mxu0
      %v307 = vadd.f32 %v228, %v306
      %v308 = vpop.f32.mrb[0].mxu0
      %v309 = vpop.f32.mrb[0].mxu0
      %v310 = vadd.f32 %v233, %v309
      %v311 = vpop.f32.mrb[0].mxu0
      %312 = vdwg.mxu0
      %313 = vst [vmem:[%s201] sm:$0xff] %v299
      %314 = vst [vmem:[%s201 + $0x8] sm:$0xff] %v302
      %315 = vst [vmem:[%s201 + $0x10] sm:$0xff] %v307
      %316 = vst [vmem:[%s201 + $0x18] sm:$0xff] %v310
      %p317 = scmp.lt.s32.totalorder %s18, 1
      %s318 = scalar_select %p317, %s18, 1
      %p319 = scmp.lt.s32.totalorder %s19, 0
      %s320 = scalar_select %p319, %s19, 0
      %s321 = smul.addr %s318, 4
      %s322 = sadd.s32 %s320, %s321
      %s323 = smul.addr %s322, 8
      %s324 = scalar_lea.vmem %s3, %s323
      // Predicated region
      $region33: #{_lambda_.7} parent=31 // pred_check
        %p325 = pneg %p116
      $region34: #{_lambda_.7} parent=31 // pred_check_branch
        %327 = sbr.rel (%p325) target = $region36
      $region35: #{_lambda_.7} parent=31 // pred_region
        _
      $region36: #{_lambda_.7} parent=31 // pred_fallthru
        _
    $region32: #{_lambda_.7} parent=5 // pred_fallthru
      _
    %p328 = scmp.le.s32.totalorder 2, %s9
    // Predicated region
    $region37: #{_lambda_.7} parent=5 // pred_check
      %p329 = pneg %p328
    $region38: #{_lambda_.7} parent=5 // pred_check_branch
      %331 = sbr.rel (%p329) target = $region40
    $region39: #{_lambda_.7} parent=5 // pred_region
      %s332 = ssub.s32 %s9, 2
      // Predicated region
      $region41: #{_lambda_.7} parent=39 // pred_check
        %p333 = pneg %p122
      $region42: #{_lambda_.7} parent=39 // pred_check_branch
        %335 = sbr.rel (%p333) target = $region44
      $region43: #{_lambda_.7} parent=39 // pred_region
        %p336 = scmp.lt.s32.totalorder %s20, 1
        %s337 = scalar_select %p336, %s20, 1
        %p338 = scmp.lt.s32.totalorder %s21, 0
        %s339 = scalar_select %p338, %s21, 0
        %s340 = smul.addr %s337, 4
        %s341 = sadd.s32 %s339, %s340
        %s342 = smul.addr %s341, 8
        %s343 = scalar_lea.vmem %s3, %s342
      $region44: #{_lambda_.7} parent=39 // pred_fallthru
        _
    $region40: #{_lambda_.7} parent=5 // pred_fallthru
      _
  $region6: #{_lambda_.7} parent=0 // loop_footer
    %s13 = sadd.s32 1, %s9
  $region7: #{_lambda_.7} parent=0 // loop_footer_branch
    %8 = sbr.rel target = $region3
  $region8: #{_lambda_.7} parent=0 // loop_exit
    _

// kernel: _lambda_.6
$region0: #{_lambda_.6}
  #allocation0 [shape = 'u32[]', space=smem, size = 0x4, offset = 0x4, fixed_abs, tag = 'smem constant byte address 0x4 - core index']
  #allocation1 [shape = 'u32[144,128]{1,0:T(1,128)}', space=vmem, size = 0x12000, scoped, tag = 'internal scratch']
  #allocation2 [shape = 'f32[1,128]{1,0:T(1,128)}', space=vmem, size = 0x200, scoped, tag = 'scratch operand']
  #allocation3 [shape = 'f32[1,128]{1,0:T(1,128)}', space=vmem, size = 0x200, scoped, tag = 'scratch operand']
  #allocation4 [shape = 'f32[8,128]{1,0:T(8,128)}', space=vmem, size = 0x1000, scoped, tag = 'scratch operand']
  %s0 = inlined_call_operand.vmem [shape: bf16[2,1,4,8,128], index: 0, kind: input, shape index: {}]
  %s1 = inlined_call_operand.vmem [shape: bf16[2,2,4,8,128], index: 1, kind: input, shape index: {}, may-alias: {1,2}]
  %s2 = inlined_call_operand.vmem [shape: bf16[2,2,4,8,128], index: 2, kind: input, shape index: {}, may-alias: {1,2}]
  %s3 = inlined_call_operand.vmem [shape: bf16[2,4,8,128], index: 3, kind: output, shape index: {}]
  %s4 = sld [smem:[#allocation0]]
  $region53: #{_lambda_.6} parent=0
    _
  %s6 = ssub.s32 1, %s4
  %s7 = scalar_select 0, %s6, %s4
  loop: start=0, step=1, limit=10
  $region2: #{_lambda_.6} parent=0 // loop_pre_header
    _
  $region3: #{_lambda_.6} parent=0 // loop_header
    %s9 = sphi 0, %s13
    %p10 = scmp.ge.s32.totalorder %s9, 10
    %s16 = sphi 0, %s42
    %s17 = sphi 0, %s38
    %s18 = sphi 0, %s34
    %s19 = sphi 0, %s30
    %s20 = sphi 0, %s16
    %s21 = sphi 0, %s17
    %s22 = sphi 0, %s18
    %s23 = sphi 0, %s19
    %s24 = sphi 0, %s20
    %s25 = sphi 0, %s21
    %s26 = sphi 0, %s22
    %s27 = sphi 0, %s23
    %s49 = sphi 0, %s51
    %s52 = sphi 0, %s49
    %s53 = sphi 0, %s52
    %s69 = sphi 0, %s53
    %s79 = sphi 0, %s81
    %s82 = sphi 0, %s79
    %s83 = sphi 0, %s82
    %s99 = sphi 0, %s83
    %s109 = sphi 0, %s111
    %s112 = sphi 0, %s109
    %s113 = sphi 0, %s112
    %s129 = sphi 0, %s113
    %s139 = sphi 0, %s141
    %s142 = sphi 0, %s139
    %s143 = sphi 0, %s142
    %s159 = sphi 0, %s143
  $region4: #{_lambda_.6} parent=0 // loop_header_branch
    %12 = sbr.rel (%p10) target = $region8
  $region5: #{_lambda_.6} parent=0 // loop_body
    %s14 = ssub.s32 %s9, 1
    %s15 = ssub.s32 %s9, 2
    %s28 = sadd.s32 1, %s19
    %p29 = scmp.ge.s32.totalorder %s28, 1
    %s30 = scalar_select %p29, 0, %s28
    %s31 = sadd.s32 1, %s18
    %s32 = scalar_select %p29, %s31, %s18
    %p33 = scmp.ge.s32.totalorder %s32, 1
    %s34 = scalar_select %p33, 0, %s32
    %s35 = sadd.s32 1, %s17
    %s36 = scalar_select %p33, %s35, %s17
    %p37 = scmp.ge.s32.totalorder %s36, 4
    %s38 = scalar_select %p37, 0, %s36
    %s39 = sadd.s32 1, %s16
    %s40 = scalar_select %p37, %s39, %s16
    %p41 = scmp.ge.s32.totalorder %s40, 2
    %s42 = scalar_select %p41, 0, %s40
    %s43 = ssub.s32 %s16, %s42
    %s44 = ssub.s32 %s17, %s38
    %s45 = sor.u32 %s43, %s44
    %s46 = ssub.s32 %s18, %s34
    %s47 = sor.u32 %s45, %s46
    %p48 = scmp.eq.s32.totalorder %s47, 0
    %s50 = sadd.s32 %s49, 1
    %s51 = scalar_select %p48, %s49, %s50
    %p54 = pneg %p48
    %p55 = scmp.eq.s32.totalorder %s9, 7
    %p56 = por %p54, %p55
    %p57 = scmp.ne.s32.totalorder %s49, %s52
    %p58 = scmp.eq.s32.totalorder %s9, 0
    %p59 = por %p57, %p58
    %p60 = scmp.ne.s32.totalorder %s49, %s52
    %p61 = scmp.eq.s32.totalorder %s14, 7
    %p62 = por %p60, %p61
    %p63 = scmp.ne.s32.totalorder %s52, %s53
    %p64 = scmp.eq.s32.totalorder %s14, 0
    %p65 = por %p63, %p64
    %p66 = scmp.ne.s32.totalorder %s52, %s53
    %p67 = scmp.eq.s32.totalorder %s15, 7
    %p68 = por %p66, %p67
    %p70 = scmp.ne.s32.totalorder %s53, %s69
    %p71 = scmp.eq.s32.totalorder %s15, 0
    %p72 = por %p70, %p71
    %s73 = ssub.s32 %s16, %s42
    %s74 = ssub.s32 %s17, %s38
    %s75 = sor.u32 %s73, %s74
    %s76 = ssub.s32 %s19, %s30
    %s77 = sor.u32 %s75, %s76
    %p78 = scmp.eq.s32.totalorder %s77, 0
    %s80 = sadd.s32 %s79, 1
    %s81 = scalar_select %p78, %s79, %s80
    %p84 = pneg %p78
    %p85 = scmp.eq.s32.totalorder %s9, 7
    %p86 = por %p84, %p85
    %p87 = scmp.ne.s32.totalorder %s79, %s82
    %p88 = scmp.eq.s32.totalorder %s9, 0
    %p89 = por %p87, %p88
    %p90 = scmp.ne.s32.totalorder %s79, %s82
    %p91 = scmp.eq.s32.totalorder %s14, 7
    %p92 = por %p90, %p91
    %p93 = scmp.ne.s32.totalorder %s82, %s83
    %p94 = scmp.eq.s32.totalorder %s14, 0
    %p95 = por %p93, %p94
    %p96 = scmp.ne.s32.totalorder %s82, %s83
    %p97 = scmp.eq.s32.totalorder %s15, 7
    %p98 = por %p96, %p97
    %p100 = scmp.ne.s32.totalorder %s83, %s99
    %p101 = scmp.eq.s32.totalorder %s15, 0
    %p102 = por %p100, %p101
    %s103 = ssub.s32 %s16, %s42
    %s104 = ssub.s32 %s17, %s38
    %s105 = sor.u32 %s103, %s104
    %s106 = ssub.s32 %s19, %s30
    %s107 = sor.u32 %s105, %s106
    %p108 = scmp.eq.s32.totalorder %s107, 0
    %s110 = sadd.s32 %s109, 1
    %s111 = scalar_select %p108, %s109, %s110
    %p114 = pneg %p108
    %p115 = scmp.eq.s32.totalorder %s9, 7
    %p116 = por %p114, %p115
    %p117 = scmp.ne.s32.totalorder %s109, %s112
    %p118 = scmp.eq.s32.totalorder %s9, 0
    %p119 = por %p117, %p118
    %p120 = scmp.ne.s32.totalorder %s109, %s112
    %p121 = scmp.eq.s32.totalorder %s14, 7
    %p122 = por %p120, %p121
    %p123 = scmp.ne.s32.totalorder %s112, %s113
    %p124 = scmp.eq.s32.totalorder %s14, 0
    %p125 = por %p123, %p124
    %p126 = scmp.ne.s32.totalorder %s112, %s113
    %p127 = scmp.eq.s32.totalorder %s15, 7
    %p128 = por %p126, %p127
    %p130 = scmp.ne.s32.totalorder %s113, %s129
    %p131 = scmp.eq.s32.totalorder %s15, 0
    %p132 = por %p130, %p131
    %s133 = ssub.s32 %s16, %s42
    %s134 = ssub.s32 %s17, %s38
    %s135 = sor.u32 %s133, %s134
    %s136 = ssub.s32 %s18, %s34
    %s137 = sor.u32 %s135, %s136
    %p138 = scmp.eq.s32.totalorder %s137, 0
    %s140 = sadd.s32 %s139, 1
    %s141 = scalar_select %p138, %s139, %s140
    %p144 = pneg %p138
    %p145 = scmp.eq.s32.totalorder %s9, 7
    %p146 = por %p144, %p145
    %p147 = scmp.ne.s32.totalorder %s139, %s142
    %p148 = scmp.eq.s32.totalorder %s9, 0
    %p149 = por %p147, %p148
    %p150 = scmp.ne.s32.totalorder %s139, %s142
    %p151 = scmp.eq.s32.totalorder %s14, 7
    %p152 = por %p150, %p151
    %p153 = scmp.ne.s32.totalorder %s142, %s143
    %p154 = scmp.eq.s32.totalorder %s14, 0
    %p155 = por %p153, %p154
    %p156 = scmp.ne.s32.totalorder %s142, %s143
    %p157 = scmp.eq.s32.totalorder %s15, 7
    %p158 = por %p156, %p157
    %p160 = scmp.ne.s32.totalorder %s143, %s159
    %p161 = scmp.eq.s32.totalorder %s15, 0
    %p162 = por %p160, %p161
    %p163 = scmp.le.s32.totalorder 1, %s9
    %p164 = scmp.lt.s32.totalorder %s9, 9
    %p165 = pnand %p163, %p164
    %p166 = pneg %p165
    // Predicated region
    $region9: #{_lambda_.6} parent=5 // pred_check
      _
    $region10: #{_lambda_.6} parent=5 // pred_check_branch
      %168 = sbr.rel (%p165) target = $region12
    $region11: #{_lambda_.6} parent=5 // pred_region
      %s169 = ssub.s32 %s9, 1
    $region12: #{_lambda_.6} parent=5 // pred_fallthru
      _
    %p170 = scmp.lt.s32.totalorder %s9, 8
    // Predicated region
    $region13: #{_lambda_.6} parent=5 // pred_check
      %p171 = pneg %p170
    $region14: #{_lambda_.6} parent=5 // pred_check_branch
      %173 = sbr.rel (%p171) target = $region16
    $region15: #{_lambda_.6} parent=5 // pred_region
      // Predicated region
      $region17: #{_lambda_.6} parent=15 // pred_check
        %p174 = pneg %p59
      $region18: #{_lambda_.6} parent=15 // pred_check_branch
        %176 = sbr.rel (%p174) target = $region20
      $region19: #{_lambda_.6} parent=15 // pred_region
        %p177 = scmp.lt.s32.totalorder %s16, 1
        %s178 = scalar_select %p177, %s16, 1
        %p179 = scmp.lt.s32.totalorder %s17, 3
        %s180 = scalar_select %p179, %s17, 3
        %p181 = scmp.lt.s32.totalorder %s18, 0
        %s182 = scalar_select %p181, %s18, 0
        %s183 = sadd.s32 %s182, %s180
        %s184 = smul.addr %s178, 4
        %s185 = sadd.s32 %s183, %s184
        %s186 = smul.addr %s185, 4
        %s187 = scalar_lea.vmem %s0, %s186
      $region20: #{_lambda_.6} parent=15 // pred_fallthru
        _
      // Predicated region
      $region21: #{_lambda_.6} parent=15 // pred_check
        %p188 = pneg %p89
      $region22: #{_lambda_.6} parent=15 // pred_check_branch
        %190 = sbr.rel (%p188) target = $region24
      $region23: #{_lambda_.6} parent=15 // pred_region
        %p191 = scmp.lt.s32.totalorder %s16, 1
        %s192 = scalar_select %p191, %s16, 1
        %p193 = scmp.lt.s32.totalorder %s17, 3
        %s194 = scalar_select %p193, %s17, 3
        %p195 = scmp.lt.s32.totalorder %s19, 0
        %s196 = scalar_select %p195, %s19, 0
        %s197 = sadd.s32 %s196, %s194
        %s198 = smul.addr %s192, 8
        %s199 = sadd.s32 %s197, %s198
        %s200 = smul.addr %s199, 4
        %s201 = scalar_lea.vmem %s1, %s200
      $region24: #{_lambda_.6} parent=15 // pred_fallthru
        _
      // Predicated region
      $region25: #{_lambda_.6} parent=15 // pred_check
        %p202 = pneg %p119
      $region26: #{_lambda_.6} parent=15 // pred_check_branch
        %204 = sbr.rel (%p202) target = $region28
      $region27: #{_lambda_.6} parent=15 // pred_region
        %p205 = scmp.lt.s32.totalorder %s16, 1
        %s206 = scalar_select %p205, %s16, 1
        %p207 = scmp.lt.s32.totalorder %s17, 3
        %s208 = scalar_select %p207, %s17, 3
        %p209 = scmp.lt.s32.totalorder %s19, 0
        %s210 = scalar_select %p209, %s19, 0
        %s211 = sadd.s32 %s210, %s208
        %s212 = sadd.s32 %s211, 4
        %s213 = smul.addr %s206, 8
        %s214 = sadd.s32 %s212, %s213
        %s215 = smul.addr %s214, 4
        %s216 = scalar_lea.vmem %s2, %s215
      $region28: #{_lambda_.6} parent=15 // pred_fallthru
        _
    $region16: #{_lambda_.6} parent=5 // pred_fallthru
      _
    %p217 = scmp.le.s32.totalorder 1, %s9
    %p218 = scmp.lt.s32.totalorder %s9, 9
    %p219 = pnand %p217, %p218
    %p220 = pneg %p219
    // Predicated region
    $region29: #{_lambda_.6} parent=5 // pred_check
      _
    $region30: #{_lambda_.6} parent=5 // pred_check_branch
      %222 = sbr.rel (%p219) target = $region32
    $region31: #{_lambda_.6} parent=5 // pred_region
      %s223 = ssub.s32 %s9, 1
      %p224 = scmp.lt.s32.totalorder %s20, 1
      %s225 = scalar_select %p224, %s20, 1
      %p226 = scmp.lt.s32.totalorder %s21, 3
      %s227 = scalar_select %p226, %s21, 3
      %p228 = scmp.lt.s32.totalorder %s22, 0
      %s229 = scalar_select %p228, %s22, 0
      %s230 = sadd.s32 %s229, %s227
      %s231 = smul.addr %s225, 4
      %s232 = sadd.s32 %s230, %s231
      %s233 = smul.addr %s232, 4
      %s234 = scalar_lea.vmem %s0, %s233
      %p235 = pneg %p65
      %p236 = pneg %p62
      %p237 = scmp.lt.s32.totalorder %s20, 1
      %s238 = scalar_select %p237, %s20, 1
      %p239 = scmp.lt.s32.totalorder %s21, 3
      %s240 = scalar_select %p239, %s21, 3
      %p241 = scmp.lt.s32.totalorder %s23, 0
      %s242 = scalar_select %p241, %s23, 0
      %s243 = sadd.s32 %s242, %s240
      %s244 = smul.addr %s238, 8
      %s245 = sadd.s32 %s243, %s244
      %s246 = smul.addr %s245, 4
      %s247 = scalar_lea.vmem %s1, %s246
      %p248 = pneg %p95
      %p249 = pneg %p92
      %p250 = scmp.lt.s32.totalorder %s20, 1
      %s251 = scalar_select %p250, %s20, 1
      %p252 = scmp.lt.s32.totalorder %s21, 3
      %s253 = scalar_select %p252, %s21, 3
      %p254 = scmp.lt.s32.totalorder %s23, 0
      %s255 = scalar_select %p254, %s23, 0
      %s256 = sadd.s32 %s255, %s253
      %s257 = sadd.s32 %s256, 4
      %s258 = smul.addr %s251, 8
      %s259 = sadd.s32 %s257, %s258
      %s260 = smul.addr %s259, 4
      %s261 = scalar_lea.vmem %s2, %s260
      %p262 = pneg %p125
      %p263 = pneg %p122
      %p264 = pneg %p155
      %p265 = pneg %p152
      %p266 = scmp.lt.s32.totalorder %s20, 1
      %s267 = scalar_select %p266, %s20, 1
      %p268 = scmp.lt.s32.totalorder %s21, 3
      %s269 = scalar_select %p268, %s21, 3
      %p270 = scmp.lt.s32.totalorder %s22, 0
      %s271 = scalar_select %p270, %s22, 0
      %s272 = sadd.s32 %s271, %s269
      %s273 = smul.addr %s267, 4
      %s274 = sadd.s32 %s272, %s273
      %s275 = smul.addr %s274, 4
      %s276 = scalar_lea.vmem %s3, %s275
      %p277 = scmp.lt.s32.totalorder %s20, 1
      %s278 = scalar_select %p277, %s20, 1
      %p279 = scmp.lt.s32.totalorder %s21, 3
      %s280 = scalar_select %p279, %s21, 3
      %p281 = scmp.lt.s32.totalorder %s22, 0
      %s282 = scalar_select %p281, %s22, 0
      %s283 = sadd.s32 %s282, %s280
      %s284 = smul.addr %s278, 4
      %s285 = sadd.s32 %s283, %s284
      %s286 = smul.addr %s285, 4
      %s287 = scalar_lea.vmem %s0, %s286
      %p288 = scmp.lt.s32.totalorder %s20, 1
      %s289 = scalar_select %p288, %s20, 1
      %p290 = scmp.lt.s32.totalorder %s21, 3
      %s291 = scalar_select %p290, %s21, 3
      %p292 = scmp.lt.s32.totalorder %s23, 0
      %s293 = scalar_select %p292, %s23, 0
      %s294 = sadd.s32 %s293, %s291
      %s295 = smul.addr %s289, 8
      %s296 = sadd.s32 %s294, %s295
      %s297 = smul.addr %s296, 4
      %s298 = scalar_lea.vmem %s1, %s297
      %p299 = scmp.lt.s32.totalorder %s20, 1
      %s300 = scalar_select %p299, %s20, 1
      %p301 = scmp.lt.s32.totalorder %s21, 3
      %s302 = scalar_select %p301, %s21, 3
      %p303 = scmp.lt.s32.totalorder %s23, 0
      %s304 = scalar_select %p303, %s23, 0
      %s305 = sadd.s32 %s304, %s302
      %s306 = sadd.s32 %s305, 4
      %s307 = smul.addr %s300, 8
      %s308 = sadd.s32 %s306, %s307
      %s309 = smul.addr %s308, 4
      %s310 = scalar_lea.vmem %s2, %s309
      %p311 = scmp.lt.s32.totalorder %s20, 1
      %s312 = scalar_select %p311, %s20, 1
      %p313 = scmp.lt.s32.totalorder %s21, 3
      %s314 = scalar_select %p313, %s21, 3
      %p315 = scmp.lt.s32.totalorder %s22, 0
      %s316 = scalar_select %p315, %s22, 0
      %s317 = sadd.s32 %s316, %s314
      %s318 = smul.addr %s312, 4
      %s319 = sadd.s32 %s317, %s318
      %s320 = smul.addr %s319, 4
      %s321 = scalar_lea.vmem %s3, %s320
      %p323 = scmp.eq.s32.totalorder %s23, 0
      // Predicated region
      $region33: #{_lambda_.6} parent=31 // pred_check
        %p324 = pneg %p323
      $region34: #{_lambda_.6} parent=31 // pred_check_branch
        %326 = sbr.rel (%p324) target = $region36
      $region35: #{_lambda_.6} parent=31 // pred_region
        %327 = vst [vmem:[#allocation2] sm:$0x1] -inf
        %328 = vst [vmem:[#allocation3] sm:$0x1] 0.0
        %329 = vst [vmem:[#allocation4] sm:$0xff] 0.0
      $region36: #{_lambda_.6} parent=31 // pred_fallthru
        _
      %v330 = vld [vmem:[%s287] sm:$0xf]
      %v331 = vld [vmem:[%s298] sm:$0xf]
      %v332 = vld [vmem:[%s310] sm:$0xf]
      %v333 = vunpack.c.l.bf16 %v331
      %v334 = vunpack.c.l.bf16 %v330
      %335 = vxpose.xlu0.b32.start [1/16] %v333, 128
      %336 = vxpose.xlu0.b32.cont [2/16] 0.0, 128
      %337 = vxpose.xlu0.b32.cont [3/16] 0.0, 128
      %338 = vxpose.xlu0.b32.cont [4/16] 0.0, 128
      %339 = vxpose.xlu0.b32.cont [5/16] 0.0, 128
      %340 = vxpose.xlu0.b32.cont [6/16] 0.0, 128
      %341 = vxpose.xlu0.b32.cont [7/16] 0.0, 128
      %342 = vxpose.xlu0.b32.cont [8/16] 0.0, 128
      %343 = vxpose.xlu0.b32.cont [9/16] 0.0, 128
      %344 = vxpose.xlu0.b32.cont [10/16] 0.0, 128
      %345 = vxpose.xlu0.b32.cont [11/16] 0.0, 128
      %346 = vxpose.xlu0.b32.cont [12/16] 0.0, 128
      %347 = vxpose.xlu0.b32.cont [13/16] 0.0, 128
      %348 = vxpose.xlu0.b32.cont [14/16] 0.0, 128
      %349 = vxpose.xlu0.b32.cont [15/16] 0.0, 128
      %350 = vxpose.xlu0.b32.end [16/16] 0.0, 128
      %v351 = vpop.trf.xlu0
      %v352 = vpop.trf.xlu0
      %v353 = vpop.trf.xlu0
      %v354 = vpop.trf.xlu0
      %v355 = vpop.trf.xlu0
      %v356 = vpop.trf.xlu0
      %v357 = vpop.trf.xlu0
      %v358 = vpop.trf.xlu0
      %v359 = vpop.trf.xlu0
      %v360 = vpop.trf.xlu0
      %v361 = vpop.trf.xlu0
      %v362 = vpop.trf.xlu0
      %v363 = vpop.trf.xlu0
      %v364 = vpop.trf.xlu0
      %v365 = vpop.trf.xlu0
      %v366 = vpop.trf.xlu0
      %vm367 = vcmask 64512
      %v369 = vsel %vm367, %v351, 0
      %v372 = vsel %vm367, %v352, 0
      %v375 = vsel %vm367, %v353, 0
      %v378 = vsel %vm367, %v354, 0
      %v381 = vsel %vm367, %v355, 0
      %v384 = vsel %vm367, %v356, 0
      %v387 = vsel %vm367, %v357, 0
      %v390 = vsel %vm367, %v358, 0
      %v393 = vsel %vm367, %v359, 0
      %v396 = vsel %vm367, %v360, 0
      %v399 = vsel %vm367, %v361, 0
      %v402 = vsel %vm367, %v362, 0
      %v405 = vsel %vm367, %v363, 0
      %v408 = vsel %vm367, %v364, 0
      %v411 = vsel %vm367, %v365, 0
      %v414 = vsel %vm367, %v366, 0
      %416 = vmatprep.subr.mxu0 0.0
      %417 = vmatpush1.msra.mxu0 %v334
      %418 = vmatprep.subr.mxu0 0.0
      %419 = vmatpush1.msra.mxu0 0.0
      %420 = vmatprep.subr.mxu0 0.0
      %421 = vmatpush1.msra.mxu0 0.0
      %422 = vmatprep.subr.mxu0 0.0
      %423 = vmatpush1.msra.mxu0 0.0
      %424 = vmatprep.subr.mxu0 0.0
      %425 = vmatpush1.msra.mxu0 0.0
      %426 = vmatprep.subr.mxu0 0.0
      %427 = vmatpush1.msra.mxu0 0.0
      %428 = vmatprep.subr.mxu0 0.0
      %429 = vmatpush1.msra.mxu0 0.0
      %430 = vmatprep.subr.mxu0 0.0
      %431 = vmatpush1.msra.mxu0 0.0
      %432 = vmatprep.subr.mxu0 0.0
      %433 = vmatpush1.msra.mxu0 0.0
      %434 = vmatprep.subr.mxu0 0.0
      %435 = vmatpush1.msra.mxu0 0.0
      %436 = vmatprep.subr.mxu0 0.0
      %437 = vmatpush1.msra.mxu0 0.0
      %438 = vmatprep.subr.mxu0 0.0
      %439 = vmatpush1.msra.mxu0 0.0
      %440 = vmatprep.subr.mxu0 0.0
      %441 = vmatpush1.msra.mxu0 0.0
      %442 = vmatprep.subr.mxu0 0.0
      %443 = vmatpush1.msra.mxu0 0.0
      %444 = vmatprep.subr.mxu0 0.0
      %445 = vmatpush1.msra.mxu0 0.0
      %446 = vmatprep.subr.mxu0 0.0
      %447 = vmatpush1.msra.mxu0 0.0
      %448 = vmatprep.subr.mxu0 0.0
      %449 = vmatpush1.msra.mxu0 0.0
      %450 = vmatprep.subr.mxu0 0.0
      %451 = vmatpush1.msra.mxu0 0.0
      %452 = vmatprep.subr.mxu0 0.0
      %453 = vmatpush1.msra.mxu0 0.0
      %454 = vmatprep.subr.mxu0 0.0
      %455 = vmatpush1.msra.mxu0 0.0
      %456 = vmatprep.subr.mxu0 0.0
      %457 = vmatpush1.msra.mxu0 0.0
      %458 = vmatprep.subr.mxu0 0.0
      %459 = vmatpush1.msra.mxu0 0.0
      %460 = vmatprep.subr.mxu0 0.0
      %461 = vmatpush1.msra.mxu0 0.0
      %462 = vmatprep.subr.mxu0 0.0
      %463 = vmatpush1.msra.mxu0 0.0
      %464 = vmatprep.subr.mxu0 0.0
      %465 = vmatpush1.msra.mxu0 0.0
      %466 = vmatprep.subr.mxu0 0.0
      %467 = vmatpush1.msra.mxu0 0.0
      %468 = vmatprep.subr.mxu0 0.0
      %469 = vmatpush1.msra.mxu0 0.0
      %470 = vmatprep.subr.mxu0 0.0
      %471 = vmatpush1.msra.mxu0 0.0
      %472 = vmatprep.subr.mxu0 0.0
      %473 = vmatpush1.msra.mxu0 0.0
      %474 = vmatprep.subr.mxu0 0.0
      %475 = vmatpush1.msra.mxu0 0.0
      %476 = vmatprep.subr.mxu0 0.0
      %477 = vmatpush1.msra.mxu0 0.0
      %478 = vmatprep.subr.mxu0 0.0
      %479 = vmatpush1.msra.mxu0 0.0
      %480 = vmatprep.mubr.f32.mxu0 0.0
      %481 = vmatmul.mubr.f32.gmra.mrb[0].mxu0 %v369
      %v482 = vpop.f32.mrb[0].mxu0
      %v483 = vadd.f32 0.0, %v482
      %v484 = vpop.f32.mrb[0].mxu0
      %485 = vmatprep.mubr.f32.mxu0 0.0
      %486 = vmatmul.mubr.f32.gmra.mrb[0].mxu0 %v372
      %v487 = vpop.f32.mrb[0].mxu0
      %v488 = vadd.f32 0.0, %v487
      %v489 = vpop.f32.mrb[0].mxu0
      %490 = vmatprep.mubr.f32.mxu0 0.0
      %491 = vmatmul.mubr.f32.gmra.mrb[0].mxu0 %v375
      %v492 = vpop.f32.mrb[0].mxu0
      %v493 = vadd.f32 0.0, %v492
      %v494 = vpop.f32.mrb[0].mxu0
      %495 = vmatprep.mubr.f32.mxu0 0.0
      %496 = vmatmul.mubr.f32.gmra.mrb[0].mxu0 %v378
      %v497 = vpop.f32.mrb[0].mxu0
      %v498 = vadd.f32 0.0, %v497
      %v499 = vpop.f32.mrb[0].mxu0
      %500 = vmatprep.mubr.f32.mxu0 0.0
      %501 = vmatmul.mubr.f32.gmra.mrb[0].mxu0 %v381
      %v502 = vpop.f32.mrb[0].mxu0
      %v503 = vadd.f32 0.0, %v502
      %v504 = vpop.f32.mrb[0].mxu0
      %505 = vmatprep.mubr.f32.mxu0 0.0
      %506 = vmatmul.mubr.f32.gmra.mrb[0].mxu0 %v384
      %v507 = vpop.f32.mrb[0].mxu0
      %v508 = vadd.f32 0.0, %v507
      %v509 = vpop.f32.mrb[0].mxu0
      %510 = vmatprep.mubr.f32.mxu0 0.0
      %511 = vmatmul.mubr.f32.gmra.mrb[0].mxu0 %v387
      %v512 = vpop.f32.mrb[0].mxu0
      %v513 = vadd.f32 0.0, %v512
      %v514 = vpop.f32.mrb[0].mxu0
      %515 = vmatprep.mubr.f32.mxu0 0.0
      %516 = vmatmul.mubr.f32.gmra.mrb[0].mxu0 %v390
      %v517 = vpop.f32.mrb[0].mxu0
      %v518 = vadd.f32 0.0, %v517
      %v519 = vpop.f32.mrb[0].mxu0
      %520 = vmatprep.mubr.f32.mxu0 0.0
      %521 = vmatmul.mubr.f32.gmra.mrb[0].mxu0 %v393
      %v522 = vpop.f32.mrb[0].mxu0
      %v523 = vadd.f32 0.0, %v522
      %v524 = vpop.f32.mrb[0].mxu0
      %525 = vmatprep.mubr.f32.mxu0 0.0
      %526 = vmatmul.mubr.f32.gmra.mrb[0].mxu0 %v396
      %v527 = vpop.f32.mrb[0].mxu0
      %v528 = vadd.f32 0.0, %v527
      %v529 = vpop.f32.mrb[0].mxu0
      %530 = vmatprep.mubr.f32.mxu0 0.0
      %531 = vmatmul.mubr.f32.gmra.mrb[0].mxu0 %v399
      %v532 = vpop.f32.mrb[0].mxu0
      %v533 = vadd.f32 0.0, %v532
      %v534 = vpop.f32.mrb[0].mxu0
      %535 = vmatprep.mubr.f32.mxu0 0.0
      %536 = vmatmul.mubr.f32.gmra.mrb[0].mxu0 %v402
      %v537 = vpop.f32.mrb[0].mxu0
      %v538 = vadd.f32 0.0, %v537
      %v539 = vpop.f32.mrb[0].mxu0
      %540 = vmatprep.mubr.f32.mxu0 0.0
      %541 = vmatmul.mubr.f32.gmra.mrb[0].mxu0 %v405
      %v542 = vpop.f32.mrb[0].mxu0
      %v543 = vadd.f32 0.0, %v542
      %v544 = vpop.f32.mrb[0].mxu0
      %545 = vmatprep.mubr.f32.mxu0 0.0
      %546 = vmatmul.mubr.f32.gmra.mrb[0].mxu0 %v408
      %v547 = vpop.f32.mrb[0].mxu0
      %v548 = vadd.f32 0.0, %v547
      %v549 = vpop.f32.mrb[0].mxu0
      %550 = vmatprep.mubr.f32.mxu0 0.0
      %551 = vmatmul.mubr.f32.gmra.mrb[0].mxu0 %v411
      %v552 = vpop.f32.mrb[0].mxu0
      %v553 = vadd.f32 0.0, %v552
      %v554 = vpop.f32.mrb[0].mxu0
      %555 = vmatprep.mubr.f32.mxu0 0.0
      %556 = vmatmul.mubr.f32.gmra.mrb[0].mxu0 %v414
      %v557 = vpop.f32.mrb[0].mxu0
      %v558 = vadd.f32 0.0, %v557
      %v559 = vpop.f32.mrb[0].mxu0
      %560 = vdwg.mxu0
      %v561 = vlaneseq
      %v562 = vshrl.u32 %v561, 7
      %v563 = vadd.s32 %v562, 8
      %v564 = vadd.s32 %v562, 16
      %v565 = vadd.s32 %v562, 24
      %v566 = vadd.s32 %v562, 32
      %v567 = vadd.s32 %v562, 40
      %v568 = vadd.s32 %v562, 48
      %v569 = vadd.s32 %v562, 56
      %v570 = vadd.s32 %v562, 64
      %v571 = vadd.s32 %v562, 72
      %v572 = vadd.s32 %v562, 80
      %v573 = vadd.s32 %v562, 88
      %v574 = vadd.s32 %v562, 96
      %v575 = vadd.s32 %v562, 104
      %v576 = vadd.s32 %v562, 112
      %v577 = vadd.s32 %v562, 120
      %s578 = smul.u32 %s23, 128
      %v579 = vstv %s578
      %v580 = vadd.s32 %v562, %v579
      %v581 = vadd.s32 %v563, %v579
      %v582 = vadd.s32 %v564, %v579
      %v583 = vadd.s32 %v565, %v579
      %v584 = vadd.s32 %v566, %v579
      %v585 = vadd.s32 %v567, %v579
      %v586 = vadd.s32 %v568, %v579
      %v587 = vadd.s32 %v569, %v579
      %v588 = vadd.s32 %v570, %v579
      %v589 = vadd.s32 %v571, %v579
      %v590 = vadd.s32 %v572, %v579
      %v591 = vadd.s32 %v573, %v579
      %v592 = vadd.s32 %v574, %v579
      %v593 = vadd.s32 %v575, %v579
      %v594 = vadd.s32 %v576, %v579
      %v595 = vadd.s32 %v577, %v579
      %vm596 = vcmp.lt.s32.totalorder %v580, 16
      %vm597 = vcmp.lt.s32.totalorder %v581, 16
      %vm598 = vcmp.lt.s32.totalorder %v582, 16
      %vm599 = vcmp.lt.s32.totalorder %v583, 16
      %vm600 = vcmp.lt.s32.totalorder %v584, 16
      %vm601 = vcmp.lt.s32.totalorder %v585, 16
      %vm602 = vcmp.lt.s32.totalorder %v586, 16
      %vm603 = vcmp.lt.s32.totalorder %v587, 16
      %vm604 = vcmp.lt.s32.totalorder %v588, 16
      %vm605 = vcmp.lt.s32.totalorder %v589, 16
      %vm606 = vcmp.lt.s32.totalorder %v590, 16
      %vm607 = vcmp.lt.s32.totalorder %v591, 16
      %vm608 = vcmp.lt.s32.totalorder %v592, 16
      %vm609 = vcmp.lt.s32.totalorder %v593, 16
      %vm610 = vcmp.lt.s32.totalorder %v594, 16
      %vm611 = vcmp.lt.s32.totalorder %v595, 16
      %v612 = vsel %vm596, %v483, -1e+30
      %v613 = vsel %vm597, %v488, -1e+30
      %v614 = vsel %vm598, %v493, -1e+30
      %v615 = vsel %vm599, %v498, -1e+30
      %v616 = vsel %vm600, %v503, -1e+30
      %v617 = vsel %vm601, %v508, -1e+30
      %v618 = vsel %vm602, %v513, -1e+30
      %v619 = vsel %vm603, %v518, -1e+30
      %v620 = vsel %vm604, %v523, -1e+30
      %v621 = vsel %vm605, %v528, -1e+30
      %v622 = vsel %vm606, %v533, -1e+30
      %v623 = vsel %vm607, %v538, -1e+30
      %v624 = vsel %vm608, %v543, -1e+30
      %v625 = vsel %vm609, %v548, -1e+30
      %v626 = vsel %vm610, %v553, -1e+30
      %v627 = vsel %vm611, %v558, -1e+30
      %v628 = vld [vmem:[#allocation2] sm:$0x1]
      %v629 = vmax.f32 %v612, %v616
      %v630 = vmax.f32 %v613, %v617
      %v631 = vmax.f32 %v614, %v618
      %v632 = vmax.f32 %v615, %v619
      %v633 = vmax.f32 %v629, %v620
      %v634 = vmax.f32 %v630, %v621
      %v635 = vmax.f32 %v631, %v622
      %v636 = vmax.f32 %v632, %v623
      %v637 = vmax.f32 %v633, %v624
      %v638 = vmax.f32 %v634, %v625
      %v639 = vmax.f32 %v635, %v626
      %v640 = vmax.f32 %v636, %v627
      %v641 = vmax.f32 %v637, %v638
      %v642 = vmax.f32 %v639, %v640
      %v643 = vmax.f32 %v641, %v642
      %v644 = vrot.slane %v643, 4
      %v645 = vmax.f32 %v643, %v644
      %v646 = vrot.slane %v645, 2
      %v647 = vmax.f32 %v645, %v646
      %v648 = vrot.slane %v647, 1
      %v649 = vmax.f32 %v647, %v648
      %v650 = vmax.f32 %v628, %v649
      %v651 = vsub.f32 %v628, %v650
      %v652 = vmul.f32 %v651, 1.442695
      %v653 = vpow.pop %v652
      %v655 = vlaneseq
      %v656 = vshrl.u32 %v655, 7
      %v657 = vsub.s32 0, %v656
      %v658 = vrot.slane %v650, %v657
      %v660 = vsub.f32 %v612, %v658
      %v661 = vsub.f32 %v613, %v658
      %v662 = vsub.f32 %v614, %v658
      %v663 = vsub.f32 %v615, %v658
      %v664 = vsub.f32 %v616, %v658
      %v665 = vsub.f32 %v617, %v658
      %v666 = vsub.f32 %v618, %v658
      %v667 = vsub.f32 %v619, %v658
      %v668 = vsub.f32 %v620, %v658
      %v669 = vsub.f32 %v621, %v658
      %v670 = vsub.f32 %v622, %v658
      %v671 = vsub.f32 %v623, %v658
      %v672 = vsub.f32 %v624, %v658
      %v673 = vsub.f32 %v625, %v658
      %v674 = vsub.f32 %v626, %v658
      %v675 = vsub.f32 %v627, %v658
      %v676 = vmul.f32 %v660, 1.442695
      %v677 = vpow.pop %v676
      %v678 = vmul.f32 %v661, 1.442695
      %v679 = vpow.pop %v678
      %v680 = vmul.f32 %v662, 1.442695
      %v681 = vpow.pop %v680
      %v682 = vmul.f32 %v663, 1.442695
      %v683 = vpow.pop %v682
      %v684 = vmul.f32 %v664, 1.442695
      %v685 = vpow.pop %v684
      %v686 = vmul.f32 %v665, 1.442695
      %v687 = vpow.pop %v686
      %v688 = vmul.f32 %v666, 1.442695
      %v689 = vpow.pop %v688
      %v690 = vmul.f32 %v667, 1.442695
      %v691 = vpow.pop %v690
      %v692 = vmul.f32 %v668, 1.442695
      %v693 = vpow.pop %v692
      %v694 = vmul.f32 %v669, 1.442695
      %v695 = vpow.pop %v694
      %v696 = vmul.f32 %v670, 1.442695
      %v697 = vpow.pop %v696
      %v698 = vmul.f32 %v671, 1.442695
      %v699 = vpow.pop %v698
      %v700 = vmul.f32 %v672, 1.442695
      %v701 = vpow.pop %v700
      %v702 = vmul.f32 %v673, 1.442695
      %v703 = vpow.pop %v702
      %v704 = vmul.f32 %v674, 1.442695
      %v705 = vpow.pop %v704
      %v706 = vmul.f32 %v675, 1.442695
      %v707 = vpow.pop %v706
      %v708 = vld [vmem:[#allocation3] sm:$0x1]
      %v709 = vmul.f32 %v653, %v708
      %v710 = vadd.f32 %v677, %v679
      %v711 = vadd.f32 %v710, %v681
      %v712 = vadd.f32 %v711, %v683
      %v713 = vadd.f32 %v712, %v685
      %v714 = vadd.f32 %v713, %v687
      %v715 = vadd.f32 %v714, %v689
      %v716 = vadd.f32 %v715, %v691
      %v717 = vadd.f32 %v716, %v693
      %v718 = vadd.f32 %v717, %v695
      %v719 = vadd.f32 %v718, %v697
      %v720 = vadd.f32 %v719, %v699
      %v721 = vadd.f32 %v720, %v701
      %v722 = vadd.f32 %v721, %v703
      %v723 = vadd.f32 %v722, %v705
      %v724 = vadd.f32 %v723, %v707
      %v725 = vrot.slane %v724, 4
      %v726 = vadd.f32 %v724, %v725
      %v727 = vrot.slane %v726, 2
      %v728 = vadd.f32 %v726, %v727
      %v729 = vrot.slane %v728, 1
      %v730 = vadd.f32 %v728, %v729
      %v731 = vadd.f32 %v709, %v730
      %732 = vst [vmem:[#allocation3] sm:$0x1] %v731
      %v733 = vld [vmem:[#allocation4] sm:$0xff]
      %v735 = vlaneseq
      %v736 = vshrl.u32 %v735, 7
      %v737 = vsub.s32 0, %v736
      %v738 = vrot.slane %v653, %v737
      %v740 = vmul.f32 %v738, %v733
      %v741 = vpack.c.bf16 %v679, %v677
      %v742 = vpack.c.bf16 %v683, %v681
      %v743 = vpack.c.bf16 %v687, %v685
      %v744 = vpack.c.bf16 %v691, %v689
      %v745 = vpack.c.bf16 %v695, %v693
      %v746 = vpack.c.bf16 %v699, %v697
      %v747 = vpack.c.bf16 %v703, %v701
      %v748 = vpack.c.bf16 %v707, %v705
      %749 = vmatprep.subr.bf16.mxu0 0
      %750 = vmatpush1.bf16.msra.mxu0 %v741
      %751 = vmatprep.subr.bf16.mxu0 0
      %752 = vmatpush1.bf16.msra.mxu0 %v742
      %753 = vmatprep.subr.bf16.mxu0 0
      %754 = vmatpush1.bf16.msra.mxu0 %v743
      %755 = vmatprep.subr.bf16.mxu0 0
      %756 = vmatpush1.bf16.msra.mxu0 %v744
      %757 = vmatprep.subr.bf16.mxu0 0
      %758 = vmatpush1.bf16.msra.mxu0 %v745
      %759 = vmatprep.subr.bf16.mxu0 0
      %760 = vmatpush1.bf16.msra.mxu0 %v746
      %761 = vmatprep.subr.bf16.mxu0 0
      %762 = vmatpush1.bf16.msra.mxu0 %v747
      %763 = vmatprep.subr.bf16.mxu0 0
      %764 = vmatpush1.bf16.msra.mxu0 %v748
      %765 = vmatprep.subr.bf16.mxu0 0
      %766 = vmatpush1.bf16.msra.mxu0 0
      %767 = vmatprep.subr.bf16.mxu0 0
      %768 = vmatpush1.bf16.msra.mxu0 0
      %769 = vmatprep.subr.bf16.mxu0 0
      %770 = vmatpush1.bf16.msra.mxu0 0
      %771 = vmatprep.subr.bf16.mxu0 0
      %772 = vmatpush1.bf16.msra.mxu0 0
      %773 = vmatprep.subr.bf16.mxu0 0
      %774 = vmatpush1.bf16.msra.mxu0 0
      %775 = vmatprep.subr.bf16.mxu0 0
      %776 = vmatpush1.bf16.msra.mxu0 0
      %777 = vmatprep.subr.bf16.mxu0 0
      %778 = vmatpush1.bf16.msra.mxu0 0
      %779 = vmatprep.subr.bf16.mxu0 0
      %780 = vmatpush1.bf16.msra.mxu0 0
      %781 = vmatprep.mubr.bf16.mxu0 0
      %782 = vmatmul.mubr.bf16.gmra.mrb[0].mxu0 %v332
      %v783 = vpop.f32.mrb[0].mxu0
      %v784 = vadd.f32 0.0, %v783
      %v785 = vpop.f32.mrb[0].mxu0
      %v786 = vpop.f32.mrb[0].mxu0
      %v787 = vpop.f32.mrb[0].mxu0
      %788 = vdwg.mxu0
      %v789 = vadd.f32 %v740, %v784
      %790 = vst [vmem:[#allocation4] sm:$0xff] %v789
      %791 = vst [vmem:[#allocation2] sm:$0x1] %v650
      // Predicated region
      $region37: #{_lambda_.6} parent=31 // pred_check
        %p792 = pneg %p323
      $region38: #{_lambda_.6} parent=31 // pred_check_branch
        %794 = sbr.rel (%p792) target = $region40
      $region39: #{_lambda_.6} parent=31 // pred_region
        %v795 = vld [vmem:[#allocation3] sm:$0x1]
        %v796 = vrcp.pop %v795
        %v797 = vld [vmem:[#allocation4] sm:$0xff]
        %v799 = vlaneseq
        %v800 = vshrl.u32 %v799, 7
        %v801 = vsub.s32 0, %v800
        %v802 = vrot.slane %v796, %v801
        %v804 = vmul.f32 %v797, %v802
        %v805 = vpack.c.bf16 %v804, %v804
        %806 = vst [vmem:[%s321] sm:$0xf] %v805
      $region40: #{_lambda_.6} parent=31 // pred_fallthru
        _
      %p807 = scmp.lt.s32.totalorder %s20, 1
      %s808 = scalar_select %p807, %s20, 1
      %p809 = scmp.lt.s32.totalorder %s21, 3
      %s810 = scalar_select %p809, %s21, 3
      %p811 = scmp.lt.s32.totalorder %s22, 0
      %s812 = scalar_select %p811, %s22, 0
      %s813 = sadd.s32 %s812, %s810
      %s814 = smul.addr %s808, 4
      %s815 = sadd.s32 %s813, %s814
      %s816 = smul.addr %s815, 4
      %s817 = scalar_lea.vmem %s3, %s816
      // Predicated region
      $region41: #{_lambda_.6} parent=31 // pred_check
        %p818 = pneg %p152
      $region42: #{_lambda_.6} parent=31 // pred_check_branch
        %820 = sbr.rel (%p818) target = $region44
      $region43: #{_lambda_.6} parent=31 // pred_region
        _
      $region44: #{_lambda_.6} parent=31 // pred_fallthru
        _
    $region32: #{_lambda_.6} parent=5 // pred_fallthru
      _
    %p821 = scmp.le.s32.totalorder 2, %s9
    // Predicated region
    $region45: #{_lambda_.6} parent=5 // pred_check
      %p822 = pneg %p821
    $region46: #{_lambda_.6} parent=5 // pred_check_branch
      %824 = sbr.rel (%p822) target = $region48
    $region47: #{_lambda_.6} parent=5 // pred_region
      %s825 = ssub.s32 %s9, 2
      // Predicated region
      $region49: #{_lambda_.6} parent=47 // pred_check
        %p826 = pneg %p158
      $region50: #{_lambda_.6} parent=47 // pred_check_branch
        %828 = sbr.rel (%p826) target = $region52
      $region51: #{_lambda_.6} parent=47 // pred_region
        %p829 = scmp.lt.s32.totalorder %s24, 1
        %s830 = scalar_select %p829, %s24, 1
        %p831 = scmp.lt.s32.totalorder %s25, 3
        %s832 = scalar_select %p831, %s25, 3
        %p833 = scmp.lt.s32.totalorder %s26, 0
        %s834 = scalar_select %p833, %s26, 0
        %s835 = sadd.s32 %s834, %s832
        %s836 = smul.addr %s830, 4
        %s837 = sadd.s32 %s835, %s836
        %s838 = smul.addr %s837, 4
        %s839 = scalar_lea.vmem %s3, %s838
      $region52: #{_lambda_.6} parent=47 // pred_fallthru
        _
    $region48: #{_lambda_.6} parent=5 // pred_fallthru
      _
  $region6: #{_lambda_.6} parent=0 // loop_footer
    %s13 = sadd.s32 1, %s9
  $region7: #{_lambda_.6} parent=0 // loop_footer_branch
    %8 = sbr.rel target = $region3
  $region8: #{_lambda_.6} parent=0 // loop_exit
    _

</llo_original>
